<compile_context>
chip_gen: v5e
topology: v5e:2x2
jax: 0.10.0
libtpu: 0.0.40
codegen_flags: <defaults>
</compile_context>

<pallas_src>
import functools

import jax
import jax.numpy as jnp
from jax.experimental import pallas as pl
from jax.experimental.pallas import tpu as pltpu

EPS = 1e-5


# ---------------------------------------------------------------------------
# Fused Pallas kernels: conv-GEMM -> InstanceNorm (affine=False) -> epilogue
# ---------------------------------------------------------------------------
def _conv_in_kernel(p_ref, w_ref, o_ref, *, relu):
    # p: (Kpad, HW)  patches^T for one image (K = Cin*k*k, zero-padded)
    # w: (Cout, Kpad)
    # o: (Cout, HW)  = InstanceNorm(conv(x)) [+ ReLU]
    y = jnp.dot(w_ref[...], p_ref[...], preferred_element_type=jnp.float32)
    mean = jnp.mean(y, axis=-1, keepdims=True)
    var = jnp.mean(jnp.square(y - mean), axis=-1, keepdims=True)
    y = (y - mean) * jax.lax.rsqrt(var + EPS)
    if relu:
        y = jnp.maximum(y, 0.0)
    o_ref[...] = y


def _conv_in_res_kernel(p_ref, w_ref, r_ref, o_ref):
    # Same as above (no activation) fused with the ResBlock residual add.
    y = jnp.dot(w_ref[...], p_ref[...], preferred_element_type=jnp.float32)
    mean = jnp.mean(y, axis=-1, keepdims=True)
    var = jnp.mean(jnp.square(y - mean), axis=-1, keepdims=True)
    y = (y - mean) * jax.lax.rsqrt(var + EPS)
    o_ref[...] = y + r_ref[...]


def _fused_conv_in(patches_t, w, *, relu, residual=None):
    # patches_t: [B, Kpad, HW]   w: [Cout, Kpad]   residual: [B, Cout, HW] | None
    B, Kpad, HW = patches_t.shape
    Cout = w.shape[0]

    if residual is None:
        kernel = functools.partial(_conv_in_kernel, relu=relu)
        in_specs = [
            pl.BlockSpec((None, Kpad, HW), lambda b: (b, 0, 0)),
            pl.BlockSpec((Cout, Kpad), lambda b: (0, 0)),
        ]
        args = (patches_t, w)
    else:
        kernel = _conv_in_res_kernel
        in_specs = [
            pl.BlockSpec((None, Kpad, HW), lambda b: (b, 0, 0)),
            pl.BlockSpec((Cout, Kpad), lambda b: (0, 0)),
            pl.BlockSpec((None, Cout, HW), lambda b: (b, 0, 0)),
        ]
        args = (patches_t, w, residual)

    return pl.pallas_call(
        kernel,
        out_shape=jax.ShapeDtypeStruct((B, Cout, HW), jnp.float32),
        grid=(B,),
        in_specs=in_specs,
        out_specs=pl.BlockSpec((None, Cout, HW), lambda b: (b, 0, 0)),
        compiler_params=pltpu.CompilerParams(dimension_semantics=("parallel",)),
    )(*args)


# ---------------------------------------------------------------------------
# Host glue: reflect pad + im2col, emitted directly in the [B, K, HW] layout
# the kernel consumes (no transposes of minor dims).
# ---------------------------------------------------------------------------
def _im2col_t(x, k, stride, pad, k_align=128):
    # x: [B, C, H, W] (NCHW) -> patches^T [B, Kpad, Ho*Wo]
    # K ordering = c*k*k + di*k + dj, matching torch weight.reshape(Cout, -1).
    if pad > 0:
        x = jnp.pad(x, ((0, 0), (0, 0), (pad, pad), (pad, pad)), mode="reflect")
    B, C, H, W = x.shape
    Ho = (H - k) // stride + 1
    Wo = (W - k) // stride + 1
    cols = []
    for di in range(k):
        for dj in range(k):
            cols.append(
                x[:, :, di : di + (Ho - 1) * stride + 1 : stride,
                        dj : dj + (Wo - 1) * stride + 1 : stride]
            )
    p = jnp.stack(cols, axis=2)               # [B, C, k*k, Ho, Wo]
    p = p.reshape(B, C * k * k, Ho * Wo)      # [B, K, HW]
    K = C * k * k
    Kpad = ((K + k_align - 1) // k_align) * k_align
    if Kpad != K:
        p = jnp.pad(p, ((0, 0), (0, Kpad - K), (0, 0)))
    return p, Ho, Wo, Kpad


def _prep_weight(w, Kpad):
    # [Cout, Cin, k, k] -> [Cout, Kpad] (zero-padded contraction dim).
    Cout = w.shape[0]
    wm = w.reshape(Cout, -1)
    K = wm.shape[1]
    if Kpad != K:
        wm = jnp.pad(wm, ((0, 0), (0, Kpad - K)))
    return wm


# ---------------------------------------------------------------------------
# Conv2dBlock / ResBlock / ContentEncoder forward
# ---------------------------------------------------------------------------
def conv2d_block(x, w, k, stride, pad, *, relu):
    # reflect-pad -> conv (bias dropped: cancelled by IN) -> InstanceNorm -> ReLU?
    B = x.shape[0]
    Cout = w.shape[0]
    patches, Ho, Wo, Kpad = _im2col_t(x, k, stride, pad)
    y = _fused_conv_in(patches, _prep_weight(w, Kpad), relu=relu)  # [B, Cout, HW]
    return y.reshape(B, Cout, Ho, Wo)


def res_block(x, w1, w2):
    # ConvBlock(3x3, IN, relu) -> ConvBlock(3x3, IN, none) -> + x
    B, C, H, W = x.shape
    h = conv2d_block(x, w1, 3, 1, 1, relu=True)
    patches, Ho, Wo, Kpad = _im2col_t(h, 3, 1, 1)
    out = _fused_conv_in(
        patches, _prep_weight(w2, Kpad), relu=False,
        residual=x.reshape(B, C, H * W),
    )
    return out.reshape(B, C, Ho, Wo)


def content_encoder_forward(x, params):
    for (w, k, s, p) in params["convs"]:
        x = conv2d_block(x, w, k, s, p, relu=True)
    for (w1, w2) in params["res"]:
        x = res_block(x, w1, w2)
    return x


# ---------------------------------------------------------------------------
# Deterministic synthetic parameters (shapes follow the module __init__).
# Biases are intentionally not created: InstanceNorm(affine=False) makes them
# mathematically inert.
# ---------------------------------------------------------------------------
def init_params(key, n_downsample, n_res, input_dim, dim):
    def conv_w(k_, cout, cin, ksz):
        return jax.random.normal(k_, (cout, cin, ksz, ksz), jnp.float32) * 0.05

    convs = []
    key, sub = jax.random.split(key)
    convs.append((conv_w(sub, dim, input_dim, 7), 7, 1, 3))
    cin = dim
    for _ in range(n_downsample):
        key, sub = jax.random.split(key)
        convs.append((conv_w(sub, 2 * cin, cin, 4), 4, 2, 1))
        cin *= 2

    res = []
    for _ in range(n_res):
        key, s1 = jax.random.split(key)
        key, s2 = jax.random.split(key)
        res.append((conv_w(s1, cin, cin, 3), conv_w(s2, cin, cin, 3)))

    return {"convs": convs, "res": res}, cin  # cin == output_dim


# ---------------------------------------------------------------------------
if __name__ == "__main__":
    key = jax.random.PRNGKey(0)
    k_in, k_par = jax.random.split(key)

    B, input_dim, H, W = 2, 3, 16, 16
    n_downsample, n_res, dim = 2, 2, 8

    x = jax.random.normal(k_in, (B, input_dim, H, W), jnp.float32)
    params, output_dim = init_params(k_par, n_downsample, n_res, input_dim, dim)

    fwd = jax.jit(functools.partial(content_encoder_forward, params=params))
    out = jax.block_until_ready(fwd(x))

    expected_shape = (B, output_dim, H // (2 ** n_downsample), W // (2 ** n_downsample))
    assert out.shape == expected_shape, (out.shape, expected_shape)
    assert bool(jnp.all(jnp.isfinite(out)))
    print("KERNEL_OK")
</pallas_src>

<mosaic_0001>
module attributes {stable_mosaic.version = 11 : i64} {
  func.func @_conv_in_kernel(%arg0: i32, %arg1: memref<1x256x256xf32, #tpu.memory_space<vmem>>, %arg2: memref<8x256xf32, #tpu.memory_space<vmem>>, %arg3: memref<1x8x256xf32, #tpu.memory_space<vmem>>) attributes {dimension_semantics = [#tpu.dimension_semantics<parallel>], iteration_bounds = array<i64: 2>, scalar_prefetch = 0 : i64, scratch_operands = 0 : i64, tpu.core_type = #tpu.core_type<tc>, window_params = [{transform_indices = @transform_0, window_bounds = array<i64: 1, 256, 256>}, {pipeline_mode = #tpu.pipeline_mode<synchronous>, transform_indices = @transform_1, window_bounds = array<i64: 8, 256>}, {transform_indices = @transform_2, window_bounds = array<i64: 1, 8, 256>}]} {
    %c0 = arith.constant 0 : index
    %c0_0 = arith.constant 0 : index
    %0 = vector.load %arg2[%c0, %c0_0] : memref<8x256xf32, #tpu.memory_space<vmem>>, vector<8x256xf32>
    %c0_1 = arith.constant 0 : index
    %c0_2 = arith.constant 0 : index
    %c0_3 = arith.constant 0 : index
    %1 = vector.load %arg1[%c0_1, %c0_2, %c0_3] : memref<1x256x256xf32, #tpu.memory_space<vmem>>, vector<1x256x256xf32>
    %2 = vector.shape_cast %1 : vector<1x256x256xf32> to vector<256x256xf32>
    %cst = arith.constant dense<0.000000e+00> : vector<8x256xf32>
    %3 = tpu.matmul %0, %2, %cst {dimension_numbers = #tpu.dot_dimension_numbers<[1], [0], [0], [1], [0, 0, 1, 1], [], []>} : vector<8x256xf32>, vector<256x256xf32>, vector<8x256xf32> -> vector<8x256xf32>
    %cst_4 = arith.constant dense<0.000000e+00> : vector<8xf32>
    %4 = vector.multi_reduction <add>, %3, %cst_4 [1] : vector<8x256xf32> to vector<8xf32>
    %5 = vector.shape_cast %4 : vector<8xf32> to vector<8x1xf32>
    %cst_5 = arith.constant 2.560000e+02 : f32
    %6 = vector.broadcast %cst_5 : f32 to vector<8x1xf32>
    %7 = arith.divf %5, %6 : vector<8x1xf32>
    %8 = vector.broadcast %7 : vector<8x1xf32> to vector<8x256xf32>
    %9 = arith.subf %3, %8 : vector<8x256xf32>
    %10 = arith.mulf %9, %9 : vector<8x256xf32>
    %cst_6 = arith.constant dense<0.000000e+00> : vector<8xf32>
    %11 = vector.multi_reduction <add>, %10, %cst_6 [1] : vector<8x256xf32> to vector<8xf32>
    %12 = vector.shape_cast %11 : vector<8xf32> to vector<8x1xf32>
    %cst_7 = arith.constant 2.560000e+02 : f32
    %13 = vector.broadcast %cst_7 : f32 to vector<8x1xf32>
    %14 = arith.divf %12, %13 : vector<8x1xf32>
    %15 = vector.broadcast %7 : vector<8x1xf32> to vector<8x256xf32>
    %16 = arith.subf %3, %15 : vector<8x256xf32>
    %cst_8 = arith.constant 9.99999974E-6 : f32
    %17 = vector.broadcast %cst_8 : f32 to vector<8x1xf32>
    %18 = arith.addf %14, %17 : vector<8x1xf32>
    %19 = math.rsqrt %18 : vector<8x1xf32>
    %20 = vector.broadcast %19 : vector<8x1xf32> to vector<8x256xf32>
    %21 = arith.mulf %16, %20 : vector<8x256xf32>
    %cst_9 = arith.constant 0.000000e+00 : f32
    %22 = vector.broadcast %cst_9 : f32 to vector<8x256xf32>
    %23 = arith.maximumf %21, %22 : vector<8x256xf32>
    %c0_10 = arith.constant 0 : index
    %c0_11 = arith.constant 0 : index
    %c0_12 = arith.constant 0 : index
    %24 = vector.load %arg3[%c0_10, %c0_11, %c0_12] : memref<1x8x256xf32, #tpu.memory_space<vmem>>, vector<1x8x256xf32>
    %25 = vector.shape_cast %24 : vector<1x8x256xf32> to vector<8x256xf32>
    %26 = vector.shape_cast %23 : vector<8x256xf32> to vector<1x8x256xf32>
    tpu.vector_store %arg3[%c0_10, %c0_11, %c0_12], %26 {strides = array<i32>} : memref<1x8x256xf32, #tpu.memory_space<vmem>>, vector<1x8x256xf32>,
    return
  }
  func.func @transform_0(%arg0: i32) -> (i32, i32, i32) {
    %c0_i32 = arith.constant 0 : i32
    %c0_i32_0 = arith.constant 0 : i32
    %c0_i32_1 = arith.constant 0 : i32
    return %arg0, %c0_i32, %c0_i32_0 : i32, i32, i32
  }
  func.func @transform_1(%arg0: i32) -> (i32, i32) {
    %c0_i32 = arith.constant 0 : i32
    %c0_i32_0 = arith.constant 0 : i32
    %c0_i32_1 = arith.constant 0 : i32
    return %c0_i32, %c0_i32_0 : i32, i32
  }
  func.func @transform_2(%arg0: i32) -> (i32, i32, i32) {
    %c0_i32 = arith.constant 0 : i32
    %c0_i32_0 = arith.constant 0 : i32
    %c0_i32_1 = arith.constant 0 : i32
    return %arg0, %c0_i32, %c0_i32_0 : i32, i32, i32
  }
}

module attributes {stable_mosaic.version = 11 : i64} {
  func.func @_conv_in_kernel(%arg0: i32, %arg1: memref<1x128x64xf32, #tpu.memory_space<vmem>>, %arg2: memref<16x128xf32, #tpu.memory_space<vmem>>, %arg3: memref<1x16x64xf32, #tpu.memory_space<vmem>>) attributes {dimension_semantics = [#tpu.dimension_semantics<parallel>], iteration_bounds = array<i64: 2>, scalar_prefetch = 0 : i64, scratch_operands = 0 : i64, tpu.core_type = #tpu.core_type<tc>, window_params = [{transform_indices = @transform_0, window_bounds = array<i64: 1, 128, 64>}, {pipeline_mode = #tpu.pipeline_mode<synchronous>, transform_indices = @transform_1, window_bounds = array<i64: 16, 128>}, {transform_indices = @transform_2, window_bounds = array<i64: 1, 16, 64>}]} {
    %c0 = arith.constant 0 : index
    %c0_0 = arith.constant 0 : index
    %0 = vector.load %arg2[%c0, %c0_0] : memref<16x128xf32, #tpu.memory_space<vmem>>, vector<16x128xf32>
    %c0_1 = arith.constant 0 : index
    %c0_2 = arith.constant 0 : index
    %c0_3 = arith.constant 0 : index
    %1 = vector.load %arg1[%c0_1, %c0_2, %c0_3] : memref<1x128x64xf32, #tpu.memory_space<vmem>>, vector<1x128x64xf32>
    %2 = vector.shape_cast %1 : vector<1x128x64xf32> to vector<128x64xf32>
    %cst = arith.constant dense<0.000000e+00> : vector<16x64xf32>
    %3 = tpu.matmul %0, %2, %cst {dimension_numbers = #tpu.dot_dimension_numbers<[1], [0], [0], [1], [0, 0, 1, 1], [], []>} : vector<16x128xf32>, vector<128x64xf32>, vector<16x64xf32> -> vector<16x64xf32>
    %cst_4 = arith.constant dense<0.000000e+00> : vector<16xf32>
    %4 = vector.multi_reduction <add>, %3, %cst_4 [1] : vector<16x64xf32> to vector<16xf32>
    %5 = vector.shape_cast %4 : vector<16xf32> to vector<16x1xf32>
    %cst_5 = arith.constant 6.400000e+01 : f32
    %6 = vector.broadcast %cst_5 : f32 to vector<16x1xf32>
    %7 = arith.divf %5, %6 : vector<16x1xf32>
    %8 = vector.broadcast %7 : vector<16x1xf32> to vector<16x64xf32>
    %9 = arith.subf %3, %8 : vector<16x64xf32>
    %10 = arith.mulf %9, %9 : vector<16x64xf32>
    %cst_6 = arith.constant dense<0.000000e+00> : vector<16xf32>
    %11 = vector.multi_reduction <add>, %10, %cst_6 [1] : vector<16x64xf32> to vector<16xf32>
    %12 = vector.shape_cast %11 : vector<16xf32> to vector<16x1xf32>
    %cst_7 = arith.constant 6.400000e+01 : f32
    %13 = vector.broadcast %cst_7 : f32 to vector<16x1xf32>
    %14 = arith.divf %12, %13 : vector<16x1xf32>
    %15 = vector.broadcast %7 : vector<16x1xf32> to vector<16x64xf32>
    %16 = arith.subf %3, %15 : vector<16x64xf32>
    %cst_8 = arith.constant 9.99999974E-6 : f32
    %17 = vector.broadcast %cst_8 : f32 to vector<16x1xf32>
    %18 = arith.addf %14, %17 : vector<16x1xf32>
    %19 = math.rsqrt %18 : vector<16x1xf32>
    %20 = vector.broadcast %19 : vector<16x1xf32> to vector<16x64xf32>
    %21 = arith.mulf %16, %20 : vector<16x64xf32>
    %cst_9 = arith.constant 0.000000e+00 : f32
    %22 = vector.broadcast %cst_9 : f32 to vector<16x64xf32>
    %23 = arith.maximumf %21, %22 : vector<16x64xf32>
    %c0_10 = arith.constant 0 : index
    %c0_11 = arith.constant 0 : index
    %c0_12 = arith.constant 0 : index
    %24 = vector.load %arg3[%c0_10, %c0_11, %c0_12] : memref<1x16x64xf32, #tpu.memory_space<vmem>>, vector<1x16x64xf32>
    %25 = vector.shape_cast %24 : vector<1x16x64xf32> to vector<16x64xf32>
    %26 = vector.shape_cast %23 : vector<16x64xf32> to vector<1x16x64xf32>
    tpu.vector_store %arg3[%c0_10, %c0_11, %c0_12], %26 {strides = array<i32>} : memref<1x16x64xf32, #tpu.memory_space<vmem>>, vector<1x16x64xf32>,
    return
  }
  func.func @transform_0(%arg0: i32) -> (i32, i32, i32) {
    %c0_i32 = arith.constant 0 : i32
    %c0_i32_0 = arith.constant 0 : i32
    %c0_i32_1 = arith.constant 0 : i32
    return %arg0, %c0_i32, %c0_i32_0 : i32, i32, i32
  }
  func.func @transform_1(%arg0: i32) -> (i32, i32) {
    %c0_i32 = arith.constant 0 : i32
    %c0_i32_0 = arith.constant 0 : i32
    %c0_i32_1 = arith.constant 0 : i32
    return %c0_i32, %c0_i32_0 : i32, i32
  }
  func.func @transform_2(%arg0: i32) -> (i32, i32, i32) {
    %c0_i32 = arith.constant 0 : i32
    %c0_i32_0 = arith.constant 0 : i32
    %c0_i32_1 = arith.constant 0 : i32
    return %arg0, %c0_i32, %c0_i32_0 : i32, i32, i32
  }
}

module attributes {stable_mosaic.version = 11 : i64} {
  func.func @_conv_in_kernel(%arg0: i32, %arg1: memref<1x256x16xf32, #tpu.memory_space<vmem>>, %arg2: memref<32x256xf32, #tpu.memory_space<vmem>>, %arg3: memref<1x32x16xf32, #tpu.memory_space<vmem>>) attributes {dimension_semantics = [#tpu.dimension_semantics<parallel>], iteration_bounds = array<i64: 2>, scalar_prefetch = 0 : i64, scratch_operands = 0 : i64, tpu.core_type = #tpu.core_type<tc>, window_params = [{transform_indices = @transform_0, window_bounds = array<i64: 1, 256, 16>}, {pipeline_mode = #tpu.pipeline_mode<synchronous>, transform_indices = @transform_1, window_bounds = array<i64: 32, 256>}, {transform_indices = @transform_2, window_bounds = array<i64: 1, 32, 16>}]} {
    %c0 = arith.constant 0 : index
    %c0_0 = arith.constant 0 : index
    %0 = vector.load %arg2[%c0, %c0_0] : memref<32x256xf32, #tpu.memory_space<vmem>>, vector<32x256xf32>
    %c0_1 = arith.constant 0 : index
    %c0_2 = arith.constant 0 : index
    %c0_3 = arith.constant 0 : index
    %1 = vector.load %arg1[%c0_1, %c0_2, %c0_3] : memref<1x256x16xf32, #tpu.memory_space<vmem>>, vector<1x256x16xf32>
    %2 = vector.shape_cast %1 : vector<1x256x16xf32> to vector<256x16xf32>
    %cst = arith.constant dense<0.000000e+00> : vector<32x16xf32>
    %3 = tpu.matmul %0, %2, %cst {dimension_numbers = #tpu.dot_dimension_numbers<[1], [0], [0], [1], [0, 0, 1, 1], [], []>} : vector<32x256xf32>, vector<256x16xf32>, vector<32x16xf32> -> vector<32x16xf32>
    %cst_4 = arith.constant dense<0.000000e+00> : vector<32xf32>
    %4 = vector.multi_reduction <add>, %3, %cst_4 [1] : vector<32x16xf32> to vector<32xf32>
    %5 = vector.shape_cast %4 : vector<32xf32> to vector<32x1xf32>
    %cst_5 = arith.constant 1.600000e+01 : f32
    %6 = vector.broadcast %cst_5 : f32 to vector<32x1xf32>
    %7 = arith.divf %5, %6 : vector<32x1xf32>
    %8 = vector.broadcast %7 : vector<32x1xf32> to vector<32x16xf32>
    %9 = arith.subf %3, %8 : vector<32x16xf32>
    %10 = arith.mulf %9, %9 : vector<32x16xf32>
    %cst_6 = arith.constant dense<0.000000e+00> : vector<32xf32>
    %11 = vector.multi_reduction <add>, %10, %cst_6 [1] : vector<32x16xf32> to vector<32xf32>
    %12 = vector.shape_cast %11 : vector<32xf32> to vector<32x1xf32>
    %cst_7 = arith.constant 1.600000e+01 : f32
    %13 = vector.broadcast %cst_7 : f32 to vector<32x1xf32>
    %14 = arith.divf %12, %13 : vector<32x1xf32>
    %15 = vector.broadcast %7 : vector<32x1xf32> to vector<32x16xf32>
    %16 = arith.subf %3, %15 : vector<32x16xf32>
    %cst_8 = arith.constant 9.99999974E-6 : f32
    %17 = vector.broadcast %cst_8 : f32 to vector<32x1xf32>
    %18 = arith.addf %14, %17 : vector<32x1xf32>
    %19 = math.rsqrt %18 : vector<32x1xf32>
    %20 = vector.broadcast %19 : vector<32x1xf32> to vector<32x16xf32>
    %21 = arith.mulf %16, %20 : vector<32x16xf32>
    %cst_9 = arith.constant 0.000000e+00 : f32
    %22 = vector.broadcast %cst_9 : f32 to vector<32x16xf32>
    %23 = arith.maximumf %21, %22 : vector<32x16xf32>
    %c0_10 = arith.constant 0 : index
    %c0_11 = arith.constant 0 : index
    %c0_12 = arith.constant 0 : index
    %24 = vector.load %arg3[%c0_10, %c0_11, %c0_12] : memref<1x32x16xf32, #tpu.memory_space<vmem>>, vector<1x32x16xf32>
    %25 = vector.shape_cast %24 : vector<1x32x16xf32> to vector<32x16xf32>
    %26 = vector.shape_cast %23 : vector<32x16xf32> to vector<1x32x16xf32>
    tpu.vector_store %arg3[%c0_10, %c0_11, %c0_12], %26 {strides = array<i32>} : memref<1x32x16xf32, #tpu.memory_space<vmem>>, vector<1x32x16xf32>,
    return
  }
  func.func @transform_0(%arg0: i32) -> (i32, i32, i32) {
    %c0_i32 = arith.constant 0 : i32
    %c0_i32_0 = arith.constant 0 : i32
    %c0_i32_1 = arith.constant 0 : i32
    return %arg0, %c0_i32, %c0_i32_0 : i32, i32, i32
  }
  func.func @transform_1(%arg0: i32) -> (i32, i32) {
    %c0_i32 = arith.constant 0 : i32
    %c0_i32_0 = arith.constant 0 : i32
    %c0_i32_1 = arith.constant 0 : i32
    return %c0_i32, %c0_i32_0 : i32, i32
  }
  func.func @transform_2(%arg0: i32) -> (i32, i32, i32) {
    %c0_i32 = arith.constant 0 : i32
    %c0_i32_0 = arith.constant 0 : i32
    %c0_i32_1 = arith.constant 0 : i32
    return %arg0, %c0_i32, %c0_i32_0 : i32, i32, i32
  }
}

module attributes {stable_mosaic.version = 11 : i64} {
  func.func @_conv_in_kernel(%arg0: i32, %arg1: memref<1x384x16xf32, #tpu.memory_space<vmem>>, %arg2: memref<32x384xf32, #tpu.memory_space<vmem>>, %arg3: memref<1x32x16xf32, #tpu.memory_space<vmem>>) attributes {dimension_semantics = [#tpu.dimension_semantics<parallel>], iteration_bounds = array<i64: 2>, scalar_prefetch = 0 : i64, scratch_operands = 0 : i64, tpu.core_type = #tpu.core_type<tc>, window_params = [{transform_indices = @transform_0, window_bounds = array<i64: 1, 384, 16>}, {pipeline_mode = #tpu.pipeline_mode<synchronous>, transform_indices = @transform_1, window_bounds = array<i64: 32, 384>}, {transform_indices = @transform_2, window_bounds = array<i64: 1, 32, 16>}]} {
    %c0 = arith.constant 0 : index
    %c0_0 = arith.constant 0 : index
    %0 = vector.load %arg2[%c0, %c0_0] : memref<32x384xf32, #tpu.memory_space<vmem>>, vector<32x384xf32>
    %c0_1 = arith.constant 0 : index
    %c0_2 = arith.constant 0 : index
    %c0_3 = arith.constant 0 : index
    %1 = vector.load %arg1[%c0_1, %c0_2, %c0_3] : memref<1x384x16xf32, #tpu.memory_space<vmem>>, vector<1x384x16xf32>
    %2 = vector.shape_cast %1 : vector<1x384x16xf32> to vector<384x16xf32>
    %cst = arith.constant dense<0.000000e+00> : vector<32x16xf32>
    %3 = tpu.matmul %0, %2, %cst {dimension_numbers = #tpu.dot_dimension_numbers<[1], [0], [0], [1], [0, 0, 1, 1], [], []>} : vector<32x384xf32>, vector<384x16xf32>, vector<32x16xf32> -> vector<32x16xf32>
    %cst_4 = arith.constant dense<0.000000e+00> : vector<32xf32>
    %4 = vector.multi_reduction <add>, %3, %cst_4 [1] : vector<32x16xf32> to vector<32xf32>
    %5 = vector.shape_cast %4 : vector<32xf32> to vector<32x1xf32>
    %cst_5 = arith.constant 1.600000e+01 : f32
    %6 = vector.broadcast %cst_5 : f32 to vector<32x1xf32>
    %7 = arith.divf %5, %6 : vector<32x1xf32>
    %8 = vector.broadcast %7 : vector<32x1xf32> to vector<32x16xf32>
    %9 = arith.subf %3, %8 : vector<32x16xf32>
    %10 = arith.mulf %9, %9 : vector<32x16xf32>
    %cst_6 = arith.constant dense<0.000000e+00> : vector<32xf32>
    %11 = vector.multi_reduction <add>, %10, %cst_6 [1] : vector<32x16xf32> to vector<32xf32>
    %12 = vector.shape_cast %11 : vector<32xf32> to vector<32x1xf32>
    %cst_7 = arith.constant 1.600000e+01 : f32
    %13 = vector.broadcast %cst_7 : f32 to vector<32x1xf32>
    %14 = arith.divf %12, %13 : vector<32x1xf32>
    %15 = vector.broadcast %7 : vector<32x1xf32> to vector<32x16xf32>
    %16 = arith.subf %3, %15 : vector<32x16xf32>
    %cst_8 = arith.constant 9.99999974E-6 : f32
    %17 = vector.broadcast %cst_8 : f32 to vector<32x1xf32>
    %18 = arith.addf %14, %17 : vector<32x1xf32>
    %19 = math.rsqrt %18 : vector<32x1xf32>
    %20 = vector.broadcast %19 : vector<32x1xf32> to vector<32x16xf32>
    %21 = arith.mulf %16, %20 : vector<32x16xf32>
    %cst_9 = arith.constant 0.000000e+00 : f32
    %22 = vector.broadcast %cst_9 : f32 to vector<32x16xf32>
    %23 = arith.maximumf %21, %22 : vector<32x16xf32>
    %c0_10 = arith.constant 0 : index
    %c0_11 = arith.constant 0 : index
    %c0_12 = arith.constant 0 : index
    %24 = vector.load %arg3[%c0_10, %c0_11, %c0_12] : memref<1x32x16xf32, #tpu.memory_space<vmem>>, vector<1x32x16xf32>
    %25 = vector.shape_cast %24 : vector<1x32x16xf32> to vector<32x16xf32>
    %26 = vector.shape_cast %23 : vector<32x16xf32> to vector<1x32x16xf32>
    tpu.vector_store %arg3[%c0_10, %c0_11, %c0_12], %26 {strides = array<i32>} : memref<1x32x16xf32, #tpu.memory_space<vmem>>, vector<1x32x16xf32>,
    return
  }
  func.func @transform_0(%arg0: i32) -> (i32, i32, i32) {
    %c0_i32 = arith.constant 0 : i32
    %c0_i32_0 = arith.constant 0 : i32
    %c0_i32_1 = arith.constant 0 : i32
    return %arg0, %c0_i32, %c0_i32_0 : i32, i32, i32
  }
  func.func @transform_1(%arg0: i32) -> (i32, i32) {
    %c0_i32 = arith.constant 0 : i32
    %c0_i32_0 = arith.constant 0 : i32
    %c0_i32_1 = arith.constant 0 : i32
    return %c0_i32, %c0_i32_0 : i32, i32
  }
  func.func @transform_2(%arg0: i32) -> (i32, i32, i32) {
    %c0_i32 = arith.constant 0 : i32
    %c0_i32_0 = arith.constant 0 : i32
    %c0_i32_1 = arith.constant 0 : i32
    return %arg0, %c0_i32, %c0_i32_0 : i32, i32, i32
  }
}

module attributes {stable_mosaic.version = 11 : i64} {
  func.func @_conv_in_res_kernel(%arg0: i32, %arg1: memref<1x384x16xf32, #tpu.memory_space<vmem>>, %arg2: memref<32x384xf32, #tpu.memory_space<vmem>>, %arg3: memref<1x32x16xf32, #tpu.memory_space<vmem>>, %arg4: memref<1x32x16xf32, #tpu.memory_space<vmem>>) attributes {dimension_semantics = [#tpu.dimension_semantics<parallel>], iteration_bounds = array<i64: 2>, scalar_prefetch = 0 : i64, scratch_operands = 0 : i64, tpu.core_type = #tpu.core_type<tc>, window_params = [{transform_indices = @transform_0, window_bounds = array<i64: 1, 384, 16>}, {pipeline_mode = #tpu.pipeline_mode<synchronous>, transform_indices = @transform_1, window_bounds = array<i64: 32, 384>}, {transform_indices = @transform_2, window_bounds = array<i64: 1, 32, 16>}, {transform_indices = @transform_3, window_bounds = array<i64: 1, 32, 16>}]} {
    %c0 = arith.constant 0 : index
    %c0_0 = arith.constant 0 : index
    %0 = vector.load %arg2[%c0, %c0_0] : memref<32x384xf32, #tpu.memory_space<vmem>>, vector<32x384xf32>
    %c0_1 = arith.constant 0 : index
    %c0_2 = arith.constant 0 : index
    %c0_3 = arith.constant 0 : index
    %1 = vector.load %arg1[%c0_1, %c0_2, %c0_3] : memref<1x384x16xf32, #tpu.memory_space<vmem>>, vector<1x384x16xf32>
    %2 = vector.shape_cast %1 : vector<1x384x16xf32> to vector<384x16xf32>
    %cst = arith.constant dense<0.000000e+00> : vector<32x16xf32>
    %3 = tpu.matmul %0, %2, %cst {dimension_numbers = #tpu.dot_dimension_numbers<[1], [0], [0], [1], [0, 0, 1, 1], [], []>} : vector<32x384xf32>, vector<384x16xf32>, vector<32x16xf32> -> vector<32x16xf32>
    %cst_4 = arith.constant dense<0.000000e+00> : vector<32xf32>
    %4 = vector.multi_reduction <add>, %3, %cst_4 [1] : vector<32x16xf32> to vector<32xf32>
    %5 = vector.shape_cast %4 : vector<32xf32> to vector<32x1xf32>
    %cst_5 = arith.constant 1.600000e+01 : f32
    %6 = vector.broadcast %cst_5 : f32 to vector<32x1xf32>
    %7 = arith.divf %5, %6 : vector<32x1xf32>
    %8 = vector.broadcast %7 : vector<32x1xf32> to vector<32x16xf32>
    %9 = arith.subf %3, %8 : vector<32x16xf32>
    %10 = arith.mulf %9, %9 : vector<32x16xf32>
    %cst_6 = arith.constant dense<0.000000e+00> : vector<32xf32>
    %11 = vector.multi_reduction <add>, %10, %cst_6 [1] : vector<32x16xf32> to vector<32xf32>
    %12 = vector.shape_cast %11 : vector<32xf32> to vector<32x1xf32>
    %cst_7 = arith.constant 1.600000e+01 : f32
    %13 = vector.broadcast %cst_7 : f32 to vector<32x1xf32>
    %14 = arith.divf %12, %13 : vector<32x1xf32>
    %15 = vector.broadcast %7 : vector<32x1xf32> to vector<32x16xf32>
    %16 = arith.subf %3, %15 : vector<32x16xf32>
    %cst_8 = arith.constant 9.99999974E-6 : f32
    %17 = vector.broadcast %cst_8 : f32 to vector<32x1xf32>
    %18 = arith.addf %14, %17 : vector<32x1xf32>
    %19 = math.rsqrt %18 : vector<32x1xf32>
    %20 = vector.broadcast %19 : vector<32x1xf32> to vector<32x16xf32>
    %21 = arith.mulf %16, %20 : vector<32x16xf32>
    %c0_9 = arith.constant 0 : index
    %c0_10 = arith.constant 0 : index
    %c0_11 = arith.constant 0 : index
    %22 = vector.load %arg3[%c0_9, %c0_10, %c0_11] : memref<1x32x16xf32, #tpu.memory_space<vmem>>, vector<1x32x16xf32>
    %23 = vector.shape_cast %22 : vector<1x32x16xf32> to vector<32x16xf32>
    %24 = arith.addf %21, %23 : vector<32x16xf32>
    %c0_12 = arith.constant 0 : index
    %c0_13 = arith.constant 0 : index
    %c0_14 = arith.constant 0 : index
    %25 = vector.load %arg4[%c0_12, %c0_13, %c0_14] : memref<1x32x16xf32, #tpu.memory_space<vmem>>, vector<1x32x16xf32>
    %26 = vector.shape_cast %25 : vector<1x32x16xf32> to vector<32x16xf32>
    %27 = vector.shape_cast %24 : vector<32x16xf32> to vector<1x32x16xf32>
    tpu.vector_store %arg4[%c0_12, %c0_13, %c0_14], %27 {strides = array<i32>} : memref<1x32x16xf32, #tpu.memory_space<vmem>>, vector<1x32x16xf32>,
    return
  }
  func.func @transform_0(%arg0: i32) -> (i32, i32, i32) {
    %c0_i32 = arith.constant 0 : i32
    %c0_i32_0 = arith.constant 0 : i32
    %c0_i32_1 = arith.constant 0 : i32
    return %arg0, %c0_i32, %c0_i32_0 : i32, i32, i32
  }
  func.func @transform_1(%arg0: i32) -> (i32, i32) {
    %c0_i32 = arith.constant 0 : i32
    %c0_i32_0 = arith.constant 0 : i32
    %c0_i32_1 = arith.constant 0 : i32
    return %c0_i32, %c0_i32_0 : i32, i32
  }
  func.func @transform_2(%arg0: i32) -> (i32, i32, i32) {
    %c0_i32 = arith.constant 0 : i32
    %c0_i32_0 = arith.constant 0 : i32
    %c0_i32_1 = arith.constant 0 : i32
    return %arg0, %c0_i32, %c0_i32_0 : i32, i32, i32
  }
  func.func @transform_3(%arg0: i32) -> (i32, i32, i32) {
    %c0_i32 = arith.constant 0 : i32
    %c0_i32_0 = arith.constant 0 : i32
    %c0_i32_1 = arith.constant 0 : i32
    return %arg0, %c0_i32, %c0_i32_0 : i32, i32, i32
  }
}

</mosaic_0001>

<llo_original>
// kernel: content_encoder_forward.7
$region0: #{content_encoder_forward.7}
  #allocation0 [shape = 'u32[]', space=smem, size = 0x4, offset = 0x4, fixed_abs, tag = 'smem constant byte address 0x4 - core index']
  #allocation1 [shape = 'u32[72,128]{1,0:T(1,128)}', space=vmem, size = 0x9000, scoped, tag = 'internal scratch']
  %s0 = inlined_call_operand.vmem [shape: f32[2,256,256], index: 0, kind: input, shape index: {}]
  %s1 = inlined_call_operand.vmem [shape: f32[8,256], index: 1, kind: input, shape index: {}]
  %s2 = inlined_call_operand.vmem [shape: f32[2,8,256], index: 2, kind: output, shape index: {}]
  %s3 = sld [smem:[#allocation0]]
  $region41: #{content_encoder_forward.7} parent=0
    _
  %s5 = ssub.s32 1, %s3
  %s6 = scalar_select 0, %s5, %s3
  loop: start=0, step=1, limit=4
  $region2: #{content_encoder_forward.7} parent=0 // loop_pre_header
    _
  $region3: #{content_encoder_forward.7} parent=0 // loop_header
    %s8 = sphi 0, %s12
    %p9 = scmp.ge.s32.totalorder %s8, 4
    %s18 = sphi 0, %s20
    %s21 = sphi 0, %s18
    %s22 = sphi 0, %s21
    %s38 = sphi 0, %s22
    %s42 = sphi 0, %s42
    %s44 = sphi 0, %s42
    %s45 = sphi 0, %s44
    %s59 = sphi 0, %s45
    %s65 = sphi 0, %s67
    %s68 = sphi 0, %s65
    %s69 = sphi 0, %s68
    %s85 = sphi 0, %s69
  $region4: #{content_encoder_forward.7} parent=0 // loop_header_branch
    %11 = sbr.rel (%p9) target = $region8
  $region5: #{content_encoder_forward.7} parent=0 // loop_body
    %s13 = ssub.s32 %s8, 1
    %s14 = ssub.s32 %s8, 2
    %s15 = sadd.s32 %s8, 1
    %s16 = ssub.s32 %s8, %s15
    %p17 = scmp.eq.s32.totalorder %s16, 0
    %s19 = sadd.s32 %s18, 1
    %s20 = scalar_select %p17, %s18, %s19
    %p23 = pneg %p17
    %p24 = scmp.eq.s32.totalorder %s8, 1
    %p25 = por %p23, %p24
    %p26 = scmp.ne.s32.totalorder %s18, %s21
    %p27 = scmp.eq.s32.totalorder %s8, 0
    %p28 = por %p26, %p27
    %p29 = scmp.ne.s32.totalorder %s18, %s21
    %p30 = scmp.eq.s32.totalorder %s13, 1
    %p31 = por %p29, %p30
    %p32 = scmp.ne.s32.totalorder %s21, %s22
    %p33 = scmp.eq.s32.totalorder %s13, 0
    %p34 = por %p32, %p33
    %p35 = scmp.ne.s32.totalorder %s21, %s22
    %p36 = scmp.eq.s32.totalorder %s14, 1
    %p37 = por %p35, %p36
    %p39 = scmp.ne.s32.totalorder %s22, %s38
    %p40 = scmp.eq.s32.totalorder %s14, 0
    %p41 = por %p39, %p40
    %s43 = sadd.s32 %s42, 1
    %p46 = scmp.eq.s32.totalorder %s8, 1
    %p47 = scmp.ne.s32.totalorder %s42, %s44
    %p48 = scmp.eq.s32.totalorder %s8, 0
    %p49 = por %p47, %p48
    %p50 = scmp.ne.s32.totalorder %s42, %s44
    %p51 = scmp.eq.s32.totalorder %s13, 1
    %p52 = por %p50, %p51
    %p53 = scmp.ne.s32.totalorder %s44, %s45
    %p54 = scmp.eq.s32.totalorder %s13, 0
    %p55 = por %p53, %p54
    %p56 = scmp.ne.s32.totalorder %s44, %s45
    %p57 = scmp.eq.s32.totalorder %s14, 1
    %p58 = por %p56, %p57
    %p60 = scmp.ne.s32.totalorder %s45, %s59
    %p61 = scmp.eq.s32.totalorder %s14, 0
    %p62 = por %p60, %p61
    %s63 = ssub.s32 %s8, %s15
    %p64 = scmp.eq.s32.totalorder %s63, 0
    %s66 = sadd.s32 %s65, 1
    %s67 = scalar_select %p64, %s65, %s66
    %p70 = pneg %p64
    %p71 = scmp.eq.s32.totalorder %s8, 1
    %p72 = por %p70, %p71
    %p73 = scmp.ne.s32.totalorder %s65, %s68
    %p74 = scmp.eq.s32.totalorder %s8, 0
    %p75 = por %p73, %p74
    %p76 = scmp.ne.s32.totalorder %s65, %s68
    %p77 = scmp.eq.s32.totalorder %s13, 1
    %p78 = por %p76, %p77
    %p79 = scmp.ne.s32.totalorder %s68, %s69
    %p80 = scmp.eq.s32.totalorder %s13, 0
    %p81 = por %p79, %p80
    %p82 = scmp.ne.s32.totalorder %s68, %s69
    %p83 = scmp.eq.s32.totalorder %s14, 1
    %p84 = por %p82, %p83
    %p86 = scmp.ne.s32.totalorder %s69, %s85
    %p87 = scmp.eq.s32.totalorder %s14, 0
    %p88 = por %p86, %p87
    %p89 = scmp.le.s32.totalorder 1, %s8
    %p90 = scmp.lt.s32.totalorder %s8, 3
    %p91 = pnand %p89, %p90
    %p92 = pneg %p91
    // Predicated region
    $region9: #{content_encoder_forward.7} parent=5 // pred_check
      _
    $region10: #{content_encoder_forward.7} parent=5 // pred_check_branch
      %94 = sbr.rel (%p91) target = $region12
    $region11: #{content_encoder_forward.7} parent=5 // pred_region
      %s95 = ssub.s32 %s8, 1
      // Predicated region
      $region13: #{content_encoder_forward.7} parent=11 // pred_check
        %p96 = pneg %p55
      $region14: #{content_encoder_forward.7} parent=11 // pred_check_branch
        %98 = sbr.rel (%p96) target = $region16
      $region15: #{content_encoder_forward.7} parent=11 // pred_region
        _
      $region16: #{content_encoder_forward.7} parent=11 // pred_fallthru
        _
    $region12: #{content_encoder_forward.7} parent=5 // pred_fallthru
      _
    %p99 = scmp.lt.s32.totalorder %s8, 2
    // Predicated region
    $region17: #{content_encoder_forward.7} parent=5 // pred_check
      %p100 = pneg %p99
    $region18: #{content_encoder_forward.7} parent=5 // pred_check_branch
      %102 = sbr.rel (%p100) target = $region20
    $region19: #{content_encoder_forward.7} parent=5 // pred_region
      // Predicated region
      $region21: #{content_encoder_forward.7} parent=19 // pred_check
        %p103 = pneg %p28
      $region22: #{content_encoder_forward.7} parent=19 // pred_check_branch
        %105 = sbr.rel (%p103) target = $region24
      $region23: #{content_encoder_forward.7} parent=19 // pred_region
        %p106 = scmp.lt.s32.totalorder %s8, 1
        %s107 = scalar_select %p106, %s8, 1
        %s108 = smul.addr %s107, 64
        %s109 = smul.addr %s108, 8
        %s110 = scalar_lea.vmem %s0, %s109
      $region24: #{content_encoder_forward.7} parent=19 // pred_fallthru
        _
    $region20: #{content_encoder_forward.7} parent=5 // pred_fallthru
      _
    %p111 = scmp.le.s32.totalorder 1, %s8
    %p112 = scmp.lt.s32.totalorder %s8, 3
    %p113 = pnand %p111, %p112
    %p114 = pneg %p113
    // Predicated region
    $region25: #{content_encoder_forward.7} parent=5 // pred_check
      _
    $region26: #{content_encoder_forward.7} parent=5 // pred_check_branch
      %116 = sbr.rel (%p113) target = $region28
    $region27: #{content_encoder_forward.7} parent=5 // pred_region
      %s117 = ssub.s32 %s8, 1
      %p118 = scmp.lt.s32.totalorder %s13, 1
      %s119 = scalar_select %p118, %s13, 1
      %s120 = smul.addr %s119, 64
      %s121 = smul.addr %s120, 8
      %s122 = scalar_lea.vmem %s0, %s121
      %p123 = pneg %p34
      %p124 = pneg %p31
      %p125 = pneg %p55
      %p126 = pneg %p52
      %p127 = pneg %p81
      %p128 = pneg %p78
      %p129 = scmp.lt.s32.totalorder %s13, 1
      %s130 = scalar_select %p129, %s13, 1
      %s131 = smul.addr %s130, 2
      %s132 = smul.addr %s131, 8
      %s133 = scalar_lea.vmem %s2, %s132
      %p134 = scmp.lt.s32.totalorder %s13, 1
      %s135 = scalar_select %p134, %s13, 1
      %s136 = smul.addr %s135, 64
      %s137 = smul.addr %s136, 8
      %s138 = scalar_lea.vmem %s0, %s137
      %p139 = scmp.lt.s32.totalorder %s13, 1
      %s140 = scalar_select %p139, %s13, 1
      %s141 = smul.addr %s140, 2
      %s142 = smul.addr %s141, 8
      %s143 = scalar_lea.vmem %s2, %s142
      %v144 = vld [vmem:[%s1] sm:$0xff]
      %v145 = vld [vmem:[%s1 + $0x8] sm:$0xff]
      %v146 = vld [vmem:[%s138] sm:$0xff]
      %v147 = vld [vmem:[%s138 + $0x8] sm:$0xff]
      %v148 = vld [vmem:[%s138 + $0x10] sm:$0xff]
      %v149 = vld [vmem:[%s138 + $0x18] sm:$0xff]
      %v150 = vld [vmem:[%s138 + $0x20] sm:$0xff]
      %v151 = vld [vmem:[%s138 + $0x28] sm:$0xff]
      %v152 = vld [vmem:[%s138 + $0x30] sm:$0xff]
      %v153 = vld [vmem:[%s138 + $0x38] sm:$0xff]
      %v154 = vld [vmem:[%s138 + $0x40] sm:$0xff]
      %v155 = vld [vmem:[%s138 + $0x48] sm:$0xff]
      %v156 = vld [vmem:[%s138 + $0x50] sm:$0xff]
      %v157 = vld [vmem:[%s138 + $0x58] sm:$0xff]
      %v158 = vld [vmem:[%s138 + $0x60] sm:$0xff]
      %v159 = vld [vmem:[%s138 + $0x68] sm:$0xff]
      %v160 = vld [vmem:[%s138 + $0x70] sm:$0xff]
      %v161 = vld [vmem:[%s138 + $0x78] sm:$0xff]
      %v162 = vld [vmem:[%s138 + $0x80] sm:$0xff]
      %v163 = vld [vmem:[%s138 + $0x88] sm:$0xff]
      %v164 = vld [vmem:[%s138 + $0x90] sm:$0xff]
      %v165 = vld [vmem:[%s138 + $0x98] sm:$0xff]
      %v166 = vld [vmem:[%s138 + $0xa0] sm:$0xff]
      %v167 = vld [vmem:[%s138 + $0xa8] sm:$0xff]
      %v168 = vld [vmem:[%s138 + $0xb0] sm:$0xff]
      %v169 = vld [vmem:[%s138 + $0xb8] sm:$0xff]
      %v170 = vld [vmem:[%s138 + $0xc0] sm:$0xff]
      %v171 = vld [vmem:[%s138 + $0xc8] sm:$0xff]
      %v172 = vld [vmem:[%s138 + $0xd0] sm:$0xff]
      %v173 = vld [vmem:[%s138 + $0xd8] sm:$0xff]
      %v174 = vld [vmem:[%s138 + $0xe0] sm:$0xff]
      %v175 = vld [vmem:[%s138 + $0xe8] sm:$0xff]
      %v176 = vld [vmem:[%s138 + $0xf0] sm:$0xff]
      %v177 = vld [vmem:[%s138 + $0xf8] sm:$0xff]
      %v178 = vld [vmem:[%s138 + $0x100] sm:$0xff]
      %v179 = vld [vmem:[%s138 + $0x108] sm:$0xff]
      %v180 = vld [vmem:[%s138 + $0x110] sm:$0xff]
      %v181 = vld [vmem:[%s138 + $0x118] sm:$0xff]
      %v182 = vld [vmem:[%s138 + $0x120] sm:$0xff]
      %v183 = vld [vmem:[%s138 + $0x128] sm:$0xff]
      %v184 = vld [vmem:[%s138 + $0x130] sm:$0xff]
      %v185 = vld [vmem:[%s138 + $0x138] sm:$0xff]
      %v186 = vld [vmem:[%s138 + $0x140] sm:$0xff]
      %v187 = vld [vmem:[%s138 + $0x148] sm:$0xff]
      %v188 = vld [vmem:[%s138 + $0x150] sm:$0xff]
      %v189 = vld [vmem:[%s138 + $0x158] sm:$0xff]
      %v190 = vld [vmem:[%s138 + $0x160] sm:$0xff]
      %v191 = vld [vmem:[%s138 + $0x168] sm:$0xff]
      %v192 = vld [vmem:[%s138 + $0x170] sm:$0xff]
      %v193 = vld [vmem:[%s138 + $0x178] sm:$0xff]
      %v194 = vld [vmem:[%s138 + $0x180] sm:$0xff]
      %v195 = vld [vmem:[%s138 + $0x188] sm:$0xff]
      %v196 = vld [vmem:[%s138 + $0x190] sm:$0xff]
      %v197 = vld [vmem:[%s138 + $0x198] sm:$0xff]
      %v198 = vld [vmem:[%s138 + $0x1a0] sm:$0xff]
      %v199 = vld [vmem:[%s138 + $0x1a8] sm:$0xff]
      %v200 = vld [vmem:[%s138 + $0x1b0] sm:$0xff]
      %v201 = vld [vmem:[%s138 + $0x1b8] sm:$0xff]
      %v202 = vld [vmem:[%s138 + $0x1c0] sm:$0xff]
      %v203 = vld [vmem:[%s138 + $0x1c8] sm:$0xff]
      %v204 = vld [vmem:[%s138 + $0x1d0] sm:$0xff]
      %v205 = vld [vmem:[%s138 + $0x1d8] sm:$0xff]
      %v206 = vld [vmem:[%s138 + $0x1e0] sm:$0xff]
      %v207 = vld [vmem:[%s138 + $0x1e8] sm:$0xff]
      %v208 = vld [vmem:[%s138 + $0x1f0] sm:$0xff]
      %v209 = vld [vmem:[%s138 + $0x1f8] sm:$0xff]
      %210 = vmatpush.msra.mxu0 %v176
      %211 = vmatpush.msra.mxu0 %v174
      %212 = vmatpush.msra.mxu0 %v172
      %213 = vmatpush.msra.mxu0 %v170
      %214 = vmatpush.msra.mxu0 %v168
      %215 = vmatpush.msra.mxu0 %v166
      %216 = vmatpush.msra.mxu0 %v164
      %217 = vmatpush.msra.mxu0 %v162
      %218 = vmatpush.msra.mxu0 %v160
      %219 = vmatpush.msra.mxu0 %v158
      %220 = vmatpush.msra.mxu0 %v156
      %221 = vmatpush.msra.mxu0 %v154
      %222 = vmatpush.msra.mxu0 %v152
      %223 = vmatpush.msra.mxu0 %v150
      %224 = vmatpush.msra.mxu0 %v148
      %225 = vmatpush.msra.mxu0 %v146
      %226 = vmatmul.f32.gmra.mxu0 %v144
      %v227 = vpop.f32.mrf.mxu0
      %v228 = vadd.f32 0.0, %v227
      %229 = vdwg.mxu0
      %230 = vmatpush.msra.mxu0 %v208
      %231 = vmatpush.msra.mxu0 %v206
      %232 = vmatpush.msra.mxu0 %v204
      %233 = vmatpush.msra.mxu0 %v202
      %234 = vmatpush.msra.mxu0 %v200
      %235 = vmatpush.msra.mxu0 %v198
      %236 = vmatpush.msra.mxu0 %v196
      %237 = vmatpush.msra.mxu0 %v194
      %238 = vmatpush.msra.mxu0 %v192
      %239 = vmatpush.msra.mxu0 %v190
      %240 = vmatpush.msra.mxu0 %v188
      %241 = vmatpush.msra.mxu0 %v186
      %242 = vmatpush.msra.mxu0 %v184
      %243 = vmatpush.msra.mxu0 %v182
      %244 = vmatpush.msra.mxu0 %v180
      %245 = vmatpush.msra.mxu0 %v178
      %246 = vmatmul.f32.gmra.mxu0 %v145
      %v247 = vpop.f32.mrf.mxu0
      %v248 = vadd.f32 %v228, %v247
      %249 = vdwg.mxu0
      %250 = vmatpush.msra.mxu0 %v177
      %251 = vmatpush.msra.mxu0 %v175
      %252 = vmatpush.msra.mxu0 %v173
      %253 = vmatpush.msra.mxu0 %v171
      %254 = vmatpush.msra.mxu0 %v169
      %255 = vmatpush.msra.mxu0 %v167
      %256 = vmatpush.msra.mxu0 %v165
      %257 = vmatpush.msra.mxu0 %v163
      %258 = vmatpush.msra.mxu0 %v161
      %259 = vmatpush.msra.mxu0 %v159
      %260 = vmatpush.msra.mxu0 %v157
      %261 = vmatpush.msra.mxu0 %v155
      %262 = vmatpush.msra.mxu0 %v153
      %263 = vmatpush.msra.mxu0 %v151
      %264 = vmatpush.msra.mxu0 %v149
      %265 = vmatpush.msra.mxu0 %v147
      %266 = vmatmul.f32.gmra.mxu0 %v144
      %v267 = vpop.f32.mrf.mxu0
      %v268 = vadd.f32 0.0, %v267
      %269 = vdwg.mxu0
      %270 = vmatpush.msra.mxu0 %v209
      %271 = vmatpush.msra.mxu0 %v207
      %272 = vmatpush.msra.mxu0 %v205
      %273 = vmatpush.msra.mxu0 %v203
      %274 = vmatpush.msra.mxu0 %v201
      %275 = vmatpush.msra.mxu0 %v199
      %276 = vmatpush.msra.mxu0 %v197
      %277 = vmatpush.msra.mxu0 %v195
      %278 = vmatpush.msra.mxu0 %v193
      %279 = vmatpush.msra.mxu0 %v191
      %280 = vmatpush.msra.mxu0 %v189
      %281 = vmatpush.msra.mxu0 %v187
      %282 = vmatpush.msra.mxu0 %v185
      %283 = vmatpush.msra.mxu0 %v183
      %284 = vmatpush.msra.mxu0 %v181
      %285 = vmatpush.msra.mxu0 %v179
      %286 = vmatmul.f32.gmra.mxu0 %v145
      %v287 = vpop.f32.mrf.mxu0
      %v288 = vadd.f32 %v268, %v287
      %289 = vdwg.mxu0
      %v290 = vadd.f32 %v248, %v288
      %291 = vadd.xlane.f32.xlu0 %v290
      %v292 = vpop.xlane.xlu0 %291
      %v293 = vrcp.pop 256.0
      %v294 = vmul.f32 256.0, %v293
      %v295 = vsub.f32 1.0, %v294
      %v296 = vmul.f32 %v293, %v295
      %v297 = vadd.f32 %v293, %v296
      %vm298 = vweird.f32 %v293
      %v299 = vsel %vm298, %v293, %v297
      %v300 = vmul.f32 %v292, %v299
      %v301 = vsub.f32 %v248, %v300
      %v302 = vsub.f32 %v288, %v300
      %v303 = vmul.f32 %v301, %v301
      %v304 = vmul.f32 %v302, %v302
      %v305 = vadd.f32 %v303, %v304
      %306 = vadd.xlane.f32.xlu0 %v305
      %v307 = vpop.xlane.xlu0 %306
      %v308 = vmul.f32 %v307, %v299
      %v309 = vadd.f32 %v308, 1e-05
      %v310 = vrsqrt.pop %v309
      %v311 = vmul.f32 %v310, %v309
      %v312 = vmul.f32 %v311, %v310
      %v313 = vmul.f32 0.5, %v312
      %v314 = vsub.f32 1.5, %v313
      %v315 = vmul.f32 %v310, %v314
      %vm316 = vweird.f32 %v309
      %vm317 = vweird.f32 %v310
      %vm318 = vmor %vm316, %vm317
      %v319 = vsel %vm318, %v310, %v315
      %v320 = vmul.f32 %v301, %v319
      %v321 = vmul.f32 %v302, %v319
      %v322 = vmax.f32 %v320, 0.0
      %v323 = vmax.f32 %v321, 0.0
      %324 = vst [vmem:[%s143] sm:$0xff] %v322
      %325 = vst [vmem:[%s143 + $0x8] sm:$0xff] %v323
      %p326 = scmp.lt.s32.totalorder %s13, 1
      %s327 = scalar_select %p326, %s13, 1
      %s328 = smul.addr %s327, 2
      %s329 = smul.addr %s328, 8
      %s330 = scalar_lea.vmem %s2, %s329
      // Predicated region
      $region29: #{content_encoder_forward.7} parent=27 // pred_check
        %p331 = pneg %p78
      $region30: #{content_encoder_forward.7} parent=27 // pred_check_branch
        %333 = sbr.rel (%p331) target = $region32
      $region31: #{content_encoder_forward.7} parent=27 // pred_region
        _
      $region32: #{content_encoder_forward.7} parent=27 // pred_fallthru
        _
    $region28: #{content_encoder_forward.7} parent=5 // pred_fallthru
      _
    %p334 = scmp.le.s32.totalorder 2, %s8
    // Predicated region
    $region33: #{content_encoder_forward.7} parent=5 // pred_check
      %p335 = pneg %p334
    $region34: #{content_encoder_forward.7} parent=5 // pred_check_branch
      %337 = sbr.rel (%p335) target = $region36
    $region35: #{content_encoder_forward.7} parent=5 // pred_region
      %s338 = ssub.s32 %s8, 2
      // Predicated region
      $region37: #{content_encoder_forward.7} parent=35 // pred_check
        %p339 = pneg %p84
      $region38: #{content_encoder_forward.7} parent=35 // pred_check_branch
        %341 = sbr.rel (%p339) target = $region40
      $region39: #{content_encoder_forward.7} parent=35 // pred_region
        %p342 = scmp.lt.s32.totalorder %s14, 1
        %s343 = scalar_select %p342, %s14, 1
        %s344 = smul.addr %s343, 2
        %s345 = smul.addr %s344, 8
        %s346 = scalar_lea.vmem %s2, %s345
      $region40: #{content_encoder_forward.7} parent=35 // pred_fallthru
        _
    $region36: #{content_encoder_forward.7} parent=5 // pred_fallthru
      _
  $region6: #{content_encoder_forward.7} parent=0 // loop_footer
    %s12 = sadd.s32 1, %s8
  $region7: #{content_encoder_forward.7} parent=0 // loop_footer_branch
    %7 = sbr.rel target = $region3
  $region8: #{content_encoder_forward.7} parent=0 // loop_exit
    _

// kernel: content_encoder_forward.8
$region0: #{content_encoder_forward.8}
  #allocation0 [shape = 'u32[]', space=smem, size = 0x4, offset = 0x4, fixed_abs, tag = 'smem constant byte address 0x4 - core index']
  #allocation1 [shape = 'u32[72,128]{1,0:T(1,128)}', space=vmem, size = 0x9000, scoped, tag = 'internal scratch']
  %s0 = inlined_call_operand.vmem [shape: f32[2,128,64], index: 0, kind: input, shape index: {}]
  %s1 = inlined_call_operand.vmem [shape: f32[16,128], index: 1, kind: input, shape index: {}]
  %s2 = inlined_call_operand.vmem [shape: f32[2,16,64], index: 2, kind: output, shape index: {}]
  %s3 = sld [smem:[#allocation0]]
  $region41: #{content_encoder_forward.8} parent=0
    _
  %s5 = ssub.s32 1, %s3
  %s6 = scalar_select 0, %s5, %s3
  loop: start=0, step=1, limit=4
  $region2: #{content_encoder_forward.8} parent=0 // loop_pre_header
    _
  $region3: #{content_encoder_forward.8} parent=0 // loop_header
    %s8 = sphi 0, %s12
    %p9 = scmp.ge.s32.totalorder %s8, 4
    %s18 = sphi 0, %s20
    %s21 = sphi 0, %s18
    %s22 = sphi 0, %s21
    %s38 = sphi 0, %s22
    %s42 = sphi 0, %s42
    %s44 = sphi 0, %s42
    %s45 = sphi 0, %s44
    %s59 = sphi 0, %s45
    %s65 = sphi 0, %s67
    %s68 = sphi 0, %s65
    %s69 = sphi 0, %s68
    %s85 = sphi 0, %s69
  $region4: #{content_encoder_forward.8} parent=0 // loop_header_branch
    %11 = sbr.rel (%p9) target = $region8
  $region5: #{content_encoder_forward.8} parent=0 // loop_body
    %s13 = ssub.s32 %s8, 1
    %s14 = ssub.s32 %s8, 2
    %s15 = sadd.s32 %s8, 1
    %s16 = ssub.s32 %s8, %s15
    %p17 = scmp.eq.s32.totalorder %s16, 0
    %s19 = sadd.s32 %s18, 1
    %s20 = scalar_select %p17, %s18, %s19
    %p23 = pneg %p17
    %p24 = scmp.eq.s32.totalorder %s8, 1
    %p25 = por %p23, %p24
    %p26 = scmp.ne.s32.totalorder %s18, %s21
    %p27 = scmp.eq.s32.totalorder %s8, 0
    %p28 = por %p26, %p27
    %p29 = scmp.ne.s32.totalorder %s18, %s21
    %p30 = scmp.eq.s32.totalorder %s13, 1
    %p31 = por %p29, %p30
    %p32 = scmp.ne.s32.totalorder %s21, %s22
    %p33 = scmp.eq.s32.totalorder %s13, 0
    %p34 = por %p32, %p33
    %p35 = scmp.ne.s32.totalorder %s21, %s22
    %p36 = scmp.eq.s32.totalorder %s14, 1
    %p37 = por %p35, %p36
    %p39 = scmp.ne.s32.totalorder %s22, %s38
    %p40 = scmp.eq.s32.totalorder %s14, 0
    %p41 = por %p39, %p40
    %s43 = sadd.s32 %s42, 1
    %p46 = scmp.eq.s32.totalorder %s8, 1
    %p47 = scmp.ne.s32.totalorder %s42, %s44
    %p48 = scmp.eq.s32.totalorder %s8, 0
    %p49 = por %p47, %p48
    %p50 = scmp.ne.s32.totalorder %s42, %s44
    %p51 = scmp.eq.s32.totalorder %s13, 1
    %p52 = por %p50, %p51
    %p53 = scmp.ne.s32.totalorder %s44, %s45
    %p54 = scmp.eq.s32.totalorder %s13, 0
    %p55 = por %p53, %p54
    %p56 = scmp.ne.s32.totalorder %s44, %s45
    %p57 = scmp.eq.s32.totalorder %s14, 1
    %p58 = por %p56, %p57
    %p60 = scmp.ne.s32.totalorder %s45, %s59
    %p61 = scmp.eq.s32.totalorder %s14, 0
    %p62 = por %p60, %p61
    %s63 = ssub.s32 %s8, %s15
    %p64 = scmp.eq.s32.totalorder %s63, 0
    %s66 = sadd.s32 %s65, 1
    %s67 = scalar_select %p64, %s65, %s66
    %p70 = pneg %p64
    %p71 = scmp.eq.s32.totalorder %s8, 1
    %p72 = por %p70, %p71
    %p73 = scmp.ne.s32.totalorder %s65, %s68
    %p74 = scmp.eq.s32.totalorder %s8, 0
    %p75 = por %p73, %p74
    %p76 = scmp.ne.s32.totalorder %s65, %s68
    %p77 = scmp.eq.s32.totalorder %s13, 1
    %p78 = por %p76, %p77
    %p79 = scmp.ne.s32.totalorder %s68, %s69
    %p80 = scmp.eq.s32.totalorder %s13, 0
    %p81 = por %p79, %p80
    %p82 = scmp.ne.s32.totalorder %s68, %s69
    %p83 = scmp.eq.s32.totalorder %s14, 1
    %p84 = por %p82, %p83
    %p86 = scmp.ne.s32.totalorder %s69, %s85
    %p87 = scmp.eq.s32.totalorder %s14, 0
    %p88 = por %p86, %p87
    %p89 = scmp.le.s32.totalorder 1, %s8
    %p90 = scmp.lt.s32.totalorder %s8, 3
    %p91 = pnand %p89, %p90
    %p92 = pneg %p91
    // Predicated region
    $region9: #{content_encoder_forward.8} parent=5 // pred_check
      _
    $region10: #{content_encoder_forward.8} parent=5 // pred_check_branch
      %94 = sbr.rel (%p91) target = $region12
    $region11: #{content_encoder_forward.8} parent=5 // pred_region
      %s95 = ssub.s32 %s8, 1
      // Predicated region
      $region13: #{content_encoder_forward.8} parent=11 // pred_check
        %p96 = pneg %p55
      $region14: #{content_encoder_forward.8} parent=11 // pred_check_branch
        %98 = sbr.rel (%p96) target = $region16
      $region15: #{content_encoder_forward.8} parent=11 // pred_region
        _
      $region16: #{content_encoder_forward.8} parent=11 // pred_fallthru
        _
    $region12: #{content_encoder_forward.8} parent=5 // pred_fallthru
      _
    %p99 = scmp.lt.s32.totalorder %s8, 2
    // Predicated region
    $region17: #{content_encoder_forward.8} parent=5 // pred_check
      %p100 = pneg %p99
    $region18: #{content_encoder_forward.8} parent=5 // pred_check_branch
      %102 = sbr.rel (%p100) target = $region20
    $region19: #{content_encoder_forward.8} parent=5 // pred_region
      // Predicated region
      $region21: #{content_encoder_forward.8} parent=19 // pred_check
        %p103 = pneg %p28
      $region22: #{content_encoder_forward.8} parent=19 // pred_check_branch
        %105 = sbr.rel (%p103) target = $region24
      $region23: #{content_encoder_forward.8} parent=19 // pred_region
        %p106 = scmp.lt.s32.totalorder %s8, 1
        %s107 = scalar_select %p106, %s8, 1
        %s108 = smul.addr %s107, 16
        %s109 = smul.addr %s108, 8
        %s110 = scalar_lea.vmem %s0, %s109
      $region24: #{content_encoder_forward.8} parent=19 // pred_fallthru
        _
    $region20: #{content_encoder_forward.8} parent=5 // pred_fallthru
      _
    %p111 = scmp.le.s32.totalorder 1, %s8
    %p112 = scmp.lt.s32.totalorder %s8, 3
    %p113 = pnand %p111, %p112
    %p114 = pneg %p113
    // Predicated region
    $region25: #{content_encoder_forward.8} parent=5 // pred_check
      _
    $region26: #{content_encoder_forward.8} parent=5 // pred_check_branch
      %116 = sbr.rel (%p113) target = $region28
    $region27: #{content_encoder_forward.8} parent=5 // pred_region
      %s117 = ssub.s32 %s8, 1
      %p118 = scmp.lt.s32.totalorder %s13, 1
      %s119 = scalar_select %p118, %s13, 1
      %s120 = smul.addr %s119, 16
      %s121 = smul.addr %s120, 8
      %s122 = scalar_lea.vmem %s0, %s121
      %p123 = pneg %p34
      %p124 = pneg %p31
      %p125 = pneg %p55
      %p126 = pneg %p52
      %p127 = pneg %p81
      %p128 = pneg %p78
      %p129 = scmp.lt.s32.totalorder %s13, 1
      %s130 = scalar_select %p129, %s13, 1
      %s131 = smul.addr %s130, 2
      %s132 = smul.addr %s131, 8
      %s133 = scalar_lea.vmem %s2, %s132
      %p134 = scmp.lt.s32.totalorder %s13, 1
      %s135 = scalar_select %p134, %s13, 1
      %s136 = smul.addr %s135, 16
      %s137 = smul.addr %s136, 8
      %s138 = scalar_lea.vmem %s0, %s137
      %p139 = scmp.lt.s32.totalorder %s13, 1
      %s140 = scalar_select %p139, %s13, 1
      %s141 = smul.addr %s140, 2
      %s142 = smul.addr %s141, 8
      %s143 = scalar_lea.vmem %s2, %s142
      %v144 = vld [vmem:[%s1] sm:$0xff]
      %v145 = vld [vmem:[%s1 + $0x8] sm:$0xff]
      %v146 = vld [vmem:[%s138] sm:$0xff]
      %v147 = vld [vmem:[%s138 + $0x8] sm:$0xff]
      %v148 = vld [vmem:[%s138 + $0x10] sm:$0xff]
      %v149 = vld [vmem:[%s138 + $0x18] sm:$0xff]
      %v150 = vld [vmem:[%s138 + $0x20] sm:$0xff]
      %v151 = vld [vmem:[%s138 + $0x28] sm:$0xff]
      %v152 = vld [vmem:[%s138 + $0x30] sm:$0xff]
      %v153 = vld [vmem:[%s138 + $0x38] sm:$0xff]
      %v154 = vld [vmem:[%s138 + $0x40] sm:$0xff]
      %v155 = vld [vmem:[%s138 + $0x48] sm:$0xff]
      %v156 = vld [vmem:[%s138 + $0x50] sm:$0xff]
      %v157 = vld [vmem:[%s138 + $0x58] sm:$0xff]
      %v158 = vld [vmem:[%s138 + $0x60] sm:$0xff]
      %v159 = vld [vmem:[%s138 + $0x68] sm:$0xff]
      %v160 = vld [vmem:[%s138 + $0x70] sm:$0xff]
      %v161 = vld [vmem:[%s138 + $0x78] sm:$0xff]
      %162 = vmatpush.msra.mxu0 %v161
      %163 = vmatpush.msra.mxu0 %v160
      %164 = vmatpush.msra.mxu0 %v159
      %165 = vmatpush.msra.mxu0 %v158
      %166 = vmatpush.msra.mxu0 %v157
      %167 = vmatpush.msra.mxu0 %v156
      %168 = vmatpush.msra.mxu0 %v155
      %169 = vmatpush.msra.mxu0 %v154
      %170 = vmatpush.msra.mxu0 %v153
      %171 = vmatpush.msra.mxu0 %v152
      %172 = vmatpush.msra.mxu0 %v151
      %173 = vmatpush.msra.mxu0 %v150
      %174 = vmatpush.msra.mxu0 %v149
      %175 = vmatpush.msra.mxu0 %v148
      %176 = vmatpush.msra.mxu0 %v147
      %177 = vmatpush.msra.mxu0 %v146
      %178 = vmatmul.f32.gmra.mxu0 %v144
      %v179 = vpop.f32.mrf.mxu0
      %v180 = vadd.f32 0.0, %v179
      %181 = vmatmul.f32.gmra.mxu0 %v145
      %v182 = vpop.f32.mrf.mxu0
      %v183 = vadd.f32 0.0, %v182
      %184 = vdwg.mxu0
      %vm185 = vcmask 523264
      %v186 = vsel %vm185, %v180, 0.0
      %187 = vadd.xlane.f32.xlu0 %v186
      %v188 = vpop.xlane.xlu0 %187
      %v189 = vsel %vm185, %v183, 0.0
      %190 = vadd.xlane.f32.xlu0 %v189
      %v191 = vpop.xlane.xlu0 %190
      %v192 = vrcp.pop 64.0
      %v193 = vmul.f32 64.0, %v192
      %v194 = vsub.f32 1.0, %v193
      %v195 = vmul.f32 %v192, %v194
      %v196 = vadd.f32 %v192, %v195
      %vm197 = vweird.f32 %v192
      %v198 = vsel %vm197, %v192, %v196
      %v199 = vmul.f32 %v188, %v198
      %v200 = vmul.f32 %v191, %v198
      %v201 = vsub.f32 %v180, %v199
      %v202 = vsub.f32 %v183, %v200
      %v203 = vmul.f32 %v201, %v201
      %v204 = vmul.f32 %v202, %v202
      %v205 = vsel %vm185, %v203, 0.0
      %206 = vadd.xlane.f32.xlu0 %v205
      %v207 = vpop.xlane.xlu0 %206
      %v208 = vsel %vm185, %v204, 0.0
      %209 = vadd.xlane.f32.xlu0 %v208
      %v210 = vpop.xlane.xlu0 %209
      %v211 = vmul.f32 %v207, %v198
      %v212 = vmul.f32 %v210, %v198
      %v213 = vadd.f32 %v211, 1e-05
      %v214 = vadd.f32 %v212, 1e-05
      %v215 = vrsqrt.pop %v213
      %v216 = vmul.f32 %v215, %v213
      %v217 = vmul.f32 %v216, %v215
      %v218 = vmul.f32 0.5, %v217
      %v219 = vsub.f32 1.5, %v218
      %v220 = vmul.f32 %v215, %v219
      %vm221 = vweird.f32 %v213
      %vm222 = vweird.f32 %v215
      %vm223 = vmor %vm221, %vm222
      %v224 = vsel %vm223, %v215, %v220
      %v225 = vrsqrt.pop %v214
      %v226 = vmul.f32 %v225, %v214
      %v227 = vmul.f32 %v226, %v225
      %v228 = vmul.f32 0.5, %v227
      %v229 = vsub.f32 1.5, %v228
      %v230 = vmul.f32 %v225, %v229
      %vm231 = vweird.f32 %v214
      %vm232 = vweird.f32 %v225
      %vm233 = vmor %vm231, %vm232
      %v234 = vsel %vm233, %v225, %v230
      %v235 = vmul.f32 %v201, %v224
      %v236 = vmul.f32 %v202, %v234
      %v237 = vmax.f32 %v235, 0.0
      %v238 = vmax.f32 %v236, 0.0
      %239 = vst.msk [vmem:[%s143] sm:$0xff] %vm185, %v237
      %240 = vst.msk [vmem:[%s143 + $0x8] sm:$0xff] %vm185, %v238
      %p241 = scmp.lt.s32.totalorder %s13, 1
      %s242 = scalar_select %p241, %s13, 1
      %s243 = smul.addr %s242, 2
      %s244 = smul.addr %s243, 8
      %s245 = scalar_lea.vmem %s2, %s244
      // Predicated region
      $region29: #{content_encoder_forward.8} parent=27 // pred_check
        %p246 = pneg %p78
      $region30: #{content_encoder_forward.8} parent=27 // pred_check_branch
        %248 = sbr.rel (%p246) target = $region32
      $region31: #{content_encoder_forward.8} parent=27 // pred_region
        _
      $region32: #{content_encoder_forward.8} parent=27 // pred_fallthru
        _
    $region28: #{content_encoder_forward.8} parent=5 // pred_fallthru
      _
    %p249 = scmp.le.s32.totalorder 2, %s8
    // Predicated region
    $region33: #{content_encoder_forward.8} parent=5 // pred_check
      %p250 = pneg %p249
    $region34: #{content_encoder_forward.8} parent=5 // pred_check_branch
      %252 = sbr.rel (%p250) target = $region36
    $region35: #{content_encoder_forward.8} parent=5 // pred_region
      %s253 = ssub.s32 %s8, 2
      // Predicated region
      $region37: #{content_encoder_forward.8} parent=35 // pred_check
        %p254 = pneg %p84
      $region38: #{content_encoder_forward.8} parent=35 // pred_check_branch
        %256 = sbr.rel (%p254) target = $region40
      $region39: #{content_encoder_forward.8} parent=35 // pred_region
        %p257 = scmp.lt.s32.totalorder %s14, 1
        %s258 = scalar_select %p257, %s14, 1
        %s259 = smul.addr %s258, 2
        %s260 = smul.addr %s259, 8
        %s261 = scalar_lea.vmem %s2, %s260
      $region40: #{content_encoder_forward.8} parent=35 // pred_fallthru
        _
    $region36: #{content_encoder_forward.8} parent=5 // pred_fallthru
      _
  $region6: #{content_encoder_forward.8} parent=0 // loop_footer
    %s12 = sadd.s32 1, %s8
  $region7: #{content_encoder_forward.8} parent=0 // loop_footer_branch
    %7 = sbr.rel target = $region3
  $region8: #{content_encoder_forward.8} parent=0 // loop_exit
    _

// kernel: content_encoder_forward.9
$region0: #{content_encoder_forward.9}
  #allocation0 [shape = 'u32[]', space=smem, size = 0x4, offset = 0x4, fixed_abs, tag = 'smem constant byte address 0x4 - core index']
  #allocation1 [shape = 'u32[72,128]{1,0:T(1,128)}', space=vmem, size = 0x9000, scoped, tag = 'internal scratch']
  %s0 = inlined_call_operand.vmem [shape: f32[2,256,16], index: 0, kind: input, shape index: {}]
  %s1 = inlined_call_operand.vmem [shape: f32[32,256], index: 1, kind: input, shape index: {}]
  %s2 = inlined_call_operand.vmem [shape: f32[2,32,16], index: 2, kind: output, shape index: {}]
  %s3 = sld [smem:[#allocation0]]
  $region41: #{content_encoder_forward.9} parent=0
    _
  %s5 = ssub.s32 1, %s3
  %s6 = scalar_select 0, %s5, %s3
  loop: start=0, step=1, limit=4
  $region2: #{content_encoder_forward.9} parent=0 // loop_pre_header
    _
  $region3: #{content_encoder_forward.9} parent=0 // loop_header
    %s8 = sphi 0, %s12
    %p9 = scmp.ge.s32.totalorder %s8, 4
    %s18 = sphi 0, %s20
    %s21 = sphi 0, %s18
    %s22 = sphi 0, %s21
    %s38 = sphi 0, %s22
    %s42 = sphi 0, %s42
    %s44 = sphi 0, %s42
    %s45 = sphi 0, %s44
    %s59 = sphi 0, %s45
    %s65 = sphi 0, %s67
    %s68 = sphi 0, %s65
    %s69 = sphi 0, %s68
    %s85 = sphi 0, %s69
  $region4: #{content_encoder_forward.9} parent=0 // loop_header_branch
    %11 = sbr.rel (%p9) target = $region8
  $region5: #{content_encoder_forward.9} parent=0 // loop_body
    %s13 = ssub.s32 %s8, 1
    %s14 = ssub.s32 %s8, 2
    %s15 = sadd.s32 %s8, 1
    %s16 = ssub.s32 %s8, %s15
    %p17 = scmp.eq.s32.totalorder %s16, 0
    %s19 = sadd.s32 %s18, 1
    %s20 = scalar_select %p17, %s18, %s19
    %p23 = pneg %p17
    %p24 = scmp.eq.s32.totalorder %s8, 1
    %p25 = por %p23, %p24
    %p26 = scmp.ne.s32.totalorder %s18, %s21
    %p27 = scmp.eq.s32.totalorder %s8, 0
    %p28 = por %p26, %p27
    %p29 = scmp.ne.s32.totalorder %s18, %s21
    %p30 = scmp.eq.s32.totalorder %s13, 1
    %p31 = por %p29, %p30
    %p32 = scmp.ne.s32.totalorder %s21, %s22
    %p33 = scmp.eq.s32.totalorder %s13, 0
    %p34 = por %p32, %p33
    %p35 = scmp.ne.s32.totalorder %s21, %s22
    %p36 = scmp.eq.s32.totalorder %s14, 1
    %p37 = por %p35, %p36
    %p39 = scmp.ne.s32.totalorder %s22, %s38
    %p40 = scmp.eq.s32.totalorder %s14, 0
    %p41 = por %p39, %p40
    %s43 = sadd.s32 %s42, 1
    %p46 = scmp.eq.s32.totalorder %s8, 1
    %p47 = scmp.ne.s32.totalorder %s42, %s44
    %p48 = scmp.eq.s32.totalorder %s8, 0
    %p49 = por %p47, %p48
    %p50 = scmp.ne.s32.totalorder %s42, %s44
    %p51 = scmp.eq.s32.totalorder %s13, 1
    %p52 = por %p50, %p51
    %p53 = scmp.ne.s32.totalorder %s44, %s45
    %p54 = scmp.eq.s32.totalorder %s13, 0
    %p55 = por %p53, %p54
    %p56 = scmp.ne.s32.totalorder %s44, %s45
    %p57 = scmp.eq.s32.totalorder %s14, 1
    %p58 = por %p56, %p57
    %p60 = scmp.ne.s32.totalorder %s45, %s59
    %p61 = scmp.eq.s32.totalorder %s14, 0
    %p62 = por %p60, %p61
    %s63 = ssub.s32 %s8, %s15
    %p64 = scmp.eq.s32.totalorder %s63, 0
    %s66 = sadd.s32 %s65, 1
    %s67 = scalar_select %p64, %s65, %s66
    %p70 = pneg %p64
    %p71 = scmp.eq.s32.totalorder %s8, 1
    %p72 = por %p70, %p71
    %p73 = scmp.ne.s32.totalorder %s65, %s68
    %p74 = scmp.eq.s32.totalorder %s8, 0
    %p75 = por %p73, %p74
    %p76 = scmp.ne.s32.totalorder %s65, %s68
    %p77 = scmp.eq.s32.totalorder %s13, 1
    %p78 = por %p76, %p77
    %p79 = scmp.ne.s32.totalorder %s68, %s69
    %p80 = scmp.eq.s32.totalorder %s13, 0
    %p81 = por %p79, %p80
    %p82 = scmp.ne.s32.totalorder %s68, %s69
    %p83 = scmp.eq.s32.totalorder %s14, 1
    %p84 = por %p82, %p83
    %p86 = scmp.ne.s32.totalorder %s69, %s85
    %p87 = scmp.eq.s32.totalorder %s14, 0
    %p88 = por %p86, %p87
    %p89 = scmp.le.s32.totalorder 1, %s8
    %p90 = scmp.lt.s32.totalorder %s8, 3
    %p91 = pnand %p89, %p90
    %p92 = pneg %p91
    // Predicated region
    $region9: #{content_encoder_forward.9} parent=5 // pred_check
      _
    $region10: #{content_encoder_forward.9} parent=5 // pred_check_branch
      %94 = sbr.rel (%p91) target = $region12
    $region11: #{content_encoder_forward.9} parent=5 // pred_region
      %s95 = ssub.s32 %s8, 1
      // Predicated region
      $region13: #{content_encoder_forward.9} parent=11 // pred_check
        %p96 = pneg %p55
      $region14: #{content_encoder_forward.9} parent=11 // pred_check_branch
        %98 = sbr.rel (%p96) target = $region16
      $region15: #{content_encoder_forward.9} parent=11 // pred_region
        _
      $region16: #{content_encoder_forward.9} parent=11 // pred_fallthru
        _
    $region12: #{content_encoder_forward.9} parent=5 // pred_fallthru
      _
    %p99 = scmp.lt.s32.totalorder %s8, 2
    // Predicated region
    $region17: #{content_encoder_forward.9} parent=5 // pred_check
      %p100 = pneg %p99
    $region18: #{content_encoder_forward.9} parent=5 // pred_check_branch
      %102 = sbr.rel (%p100) target = $region20
    $region19: #{content_encoder_forward.9} parent=5 // pred_region
      // Predicated region
      $region21: #{content_encoder_forward.9} parent=19 // pred_check
        %p103 = pneg %p28
      $region22: #{content_encoder_forward.9} parent=19 // pred_check_branch
        %105 = sbr.rel (%p103) target = $region24
      $region23: #{content_encoder_forward.9} parent=19 // pred_region
        %p106 = scmp.lt.s32.totalorder %s8, 1
        %s107 = scalar_select %p106, %s8, 1
        %s108 = smul.addr %s107, 32
        %s109 = smul.addr %s108, 8
        %s110 = scalar_lea.vmem %s0, %s109
      $region24: #{content_encoder_forward.9} parent=19 // pred_fallthru
        _
    $region20: #{content_encoder_forward.9} parent=5 // pred_fallthru
      _
    %p111 = scmp.le.s32.totalorder 1, %s8
    %p112 = scmp.lt.s32.totalorder %s8, 3
    %p113 = pnand %p111, %p112
    %p114 = pneg %p113
    // Predicated region
    $region25: #{content_encoder_forward.9} parent=5 // pred_check
      _
    $region26: #{content_encoder_forward.9} parent=5 // pred_check_branch
      %116 = sbr.rel (%p113) target = $region28
    $region27: #{content_encoder_forward.9} parent=5 // pred_region
      %s117 = ssub.s32 %s8, 1
      %p118 = scmp.lt.s32.totalorder %s13, 1
      %s119 = scalar_select %p118, %s13, 1
      %s120 = smul.addr %s119, 32
      %s121 = smul.addr %s120, 8
      %s122 = scalar_lea.vmem %s0, %s121
      %p123 = pneg %p34
      %p124 = pneg %p31
      %p125 = pneg %p55
      %p126 = pneg %p52
      %p127 = pneg %p81
      %p128 = pneg %p78
      %p129 = scmp.lt.s32.totalorder %s13, 1
      %s130 = scalar_select %p129, %s13, 1
      %s131 = smul.addr %s130, 4
      %s132 = smul.addr %s131, 8
      %s133 = scalar_lea.vmem %s2, %s132
      %p134 = scmp.lt.s32.totalorder %s13, 1
      %s135 = scalar_select %p134, %s13, 1
      %s136 = smul.addr %s135, 32
      %s137 = smul.addr %s136, 8
      %s138 = scalar_lea.vmem %s0, %s137
      %p139 = scmp.lt.s32.totalorder %s13, 1
      %s140 = scalar_select %p139, %s13, 1
      %s141 = smul.addr %s140, 4
      %s142 = smul.addr %s141, 8
      %s143 = scalar_lea.vmem %s2, %s142
      %v144 = vld [vmem:[%s1] sm:$0xff]
      %v145 = vld [vmem:[%s1 + $0x8] sm:$0xff]
      %v146 = vld [vmem:[%s1 + $0x10] sm:$0xff]
      %v147 = vld [vmem:[%s1 + $0x18] sm:$0xff]
      %v148 = vld [vmem:[%s1 + $0x20] sm:$0xff]
      %v149 = vld [vmem:[%s1 + $0x28] sm:$0xff]
      %v150 = vld [vmem:[%s1 + $0x30] sm:$0xff]
      %v151 = vld [vmem:[%s1 + $0x38] sm:$0xff]
      %v152 = vld [vmem:[%s138] sm:$0xff]
      %v153 = vld [vmem:[%s138 + $0x8] sm:$0xff]
      %v154 = vld [vmem:[%s138 + $0x10] sm:$0xff]
      %v155 = vld [vmem:[%s138 + $0x18] sm:$0xff]
      %v156 = vld [vmem:[%s138 + $0x20] sm:$0xff]
      %v157 = vld [vmem:[%s138 + $0x28] sm:$0xff]
      %v158 = vld [vmem:[%s138 + $0x30] sm:$0xff]
      %v159 = vld [vmem:[%s138 + $0x38] sm:$0xff]
      %v160 = vld [vmem:[%s138 + $0x40] sm:$0xff]
      %v161 = vld [vmem:[%s138 + $0x48] sm:$0xff]
      %v162 = vld [vmem:[%s138 + $0x50] sm:$0xff]
      %v163 = vld [vmem:[%s138 + $0x58] sm:$0xff]
      %v164 = vld [vmem:[%s138 + $0x60] sm:$0xff]
      %v165 = vld [vmem:[%s138 + $0x68] sm:$0xff]
      %v166 = vld [vmem:[%s138 + $0x70] sm:$0xff]
      %v167 = vld [vmem:[%s138 + $0x78] sm:$0xff]
      %v168 = vld [vmem:[%s138 + $0x80] sm:$0xff]
      %v169 = vld [vmem:[%s138 + $0x88] sm:$0xff]
      %v170 = vld [vmem:[%s138 + $0x90] sm:$0xff]
      %v171 = vld [vmem:[%s138 + $0x98] sm:$0xff]
      %v172 = vld [vmem:[%s138 + $0xa0] sm:$0xff]
      %v173 = vld [vmem:[%s138 + $0xa8] sm:$0xff]
      %v174 = vld [vmem:[%s138 + $0xb0] sm:$0xff]
      %v175 = vld [vmem:[%s138 + $0xb8] sm:$0xff]
      %v176 = vld [vmem:[%s138 + $0xc0] sm:$0xff]
      %v177 = vld [vmem:[%s138 + $0xc8] sm:$0xff]
      %v178 = vld [vmem:[%s138 + $0xd0] sm:$0xff]
      %v179 = vld [vmem:[%s138 + $0xd8] sm:$0xff]
      %v180 = vld [vmem:[%s138 + $0xe0] sm:$0xff]
      %v181 = vld [vmem:[%s138 + $0xe8] sm:$0xff]
      %v182 = vld [vmem:[%s138 + $0xf0] sm:$0xff]
      %v183 = vld [vmem:[%s138 + $0xf8] sm:$0xff]
      %184 = vmatpush.msra.mxu0 %v167
      %185 = vmatpush.msra.mxu0 %v166
      %186 = vmatpush.msra.mxu0 %v165
      %187 = vmatpush.msra.mxu0 %v164
      %188 = vmatpush.msra.mxu0 %v163
      %189 = vmatpush.msra.mxu0 %v162
      %190 = vmatpush.msra.mxu0 %v161
      %191 = vmatpush.msra.mxu0 %v160
      %192 = vmatpush.msra.mxu0 %v159
      %193 = vmatpush.msra.mxu0 %v158
      %194 = vmatpush.msra.mxu0 %v157
      %195 = vmatpush.msra.mxu0 %v156
      %196 = vmatpush.msra.mxu0 %v155
      %197 = vmatpush.msra.mxu0 %v154
      %198 = vmatpush.msra.mxu0 %v153
      %199 = vmatpush.msra.mxu0 %v152
      %200 = vmatmul.f32.gmra.mxu0 %v144
      %v201 = vpop.f32.mrf.mxu0
      %v202 = vadd.f32 0.0, %v201
      %203 = vmatmul.f32.gmra.mxu0 %v146
      %v204 = vpop.f32.mrf.mxu0
      %v205 = vadd.f32 0.0, %v204
      %206 = vmatmul.f32.gmra.mxu0 %v148
      %v207 = vpop.f32.mrf.mxu0
      %v208 = vadd.f32 0.0, %v207
      %209 = vmatmul.f32.gmra.mxu0 %v150
      %v210 = vpop.f32.mrf.mxu0
      %v211 = vadd.f32 0.0, %v210
      %212 = vdwg.mxu0
      %213 = vmatpush.msra.mxu0 %v183
      %214 = vmatpush.msra.mxu0 %v182
      %215 = vmatpush.msra.mxu0 %v181
      %216 = vmatpush.msra.mxu0 %v180
      %217 = vmatpush.msra.mxu0 %v179
      %218 = vmatpush.msra.mxu0 %v178
      %219 = vmatpush.msra.mxu0 %v177
      %220 = vmatpush.msra.mxu0 %v176
      %221 = vmatpush.msra.mxu0 %v175
      %222 = vmatpush.msra.mxu0 %v174
      %223 = vmatpush.msra.mxu0 %v173
      %224 = vmatpush.msra.mxu0 %v172
      %225 = vmatpush.msra.mxu0 %v171
      %226 = vmatpush.msra.mxu0 %v170
      %227 = vmatpush.msra.mxu0 %v169
      %228 = vmatpush.msra.mxu0 %v168
      %229 = vmatmul.f32.gmra.mxu0 %v145
      %v230 = vpop.f32.mrf.mxu0
      %v231 = vadd.f32 %v202, %v230
      %232 = vmatmul.f32.gmra.mxu0 %v147
      %v233 = vpop.f32.mrf.mxu0
      %v234 = vadd.f32 %v205, %v233
      %235 = vmatmul.f32.gmra.mxu0 %v149
      %v236 = vpop.f32.mrf.mxu0
      %v237 = vadd.f32 %v208, %v236
      %238 = vmatmul.f32.gmra.mxu0 %v151
      %v239 = vpop.f32.mrf.mxu0
      %v240 = vadd.f32 %v211, %v239
      %241 = vdwg.mxu0
      %vm242 = vcmask 130048
      %v243 = vsel %vm242, %v231, 0.0
      %244 = vadd.xlane.f32.xlu0 %v243
      %v245 = vpop.xlane.xlu0 %244
      %v246 = vsel %vm242, %v234, 0.0
      %247 = vadd.xlane.f32.xlu0 %v246
      %v248 = vpop.xlane.xlu0 %247
      %v249 = vsel %vm242, %v237, 0.0
      %250 = vadd.xlane.f32.xlu0 %v249
      %v251 = vpop.xlane.xlu0 %250
      %v252 = vsel %vm242, %v240, 0.0
      %253 = vadd.xlane.f32.xlu0 %v252
      %v254 = vpop.xlane.xlu0 %253
      %v255 = vrcp.pop 16.0
      %v256 = vmul.f32 16.0, %v255
      %v257 = vsub.f32 1.0, %v256
      %v258 = vmul.f32 %v255, %v257
      %v259 = vadd.f32 %v255, %v258
      %vm260 = vweird.f32 %v255
      %v261 = vsel %vm260, %v255, %v259
      %v262 = vmul.f32 %v245, %v261
      %v263 = vmul.f32 %v248, %v261
      %v264 = vmul.f32 %v251, %v261
      %v265 = vmul.f32 %v254, %v261
      %v266 = vsub.f32 %v231, %v262
      %v267 = vsub.f32 %v234, %v263
      %v268 = vsub.f32 %v237, %v264
      %v269 = vsub.f32 %v240, %v265
      %v270 = vmul.f32 %v266, %v266
      %v271 = vmul.f32 %v267, %v267
      %v272 = vmul.f32 %v268, %v268
      %v273 = vmul.f32 %v269, %v269
      %v274 = vsel %vm242, %v270, 0.0
      %275 = vadd.xlane.f32.xlu0 %v274
      %v276 = vpop.xlane.xlu0 %275
      %v277 = vsel %vm242, %v271, 0.0
      %278 = vadd.xlane.f32.xlu0 %v277
      %v279 = vpop.xlane.xlu0 %278
      %v280 = vsel %vm242, %v272, 0.0
      %281 = vadd.xlane.f32.xlu0 %v280
      %v282 = vpop.xlane.xlu0 %281
      %v283 = vsel %vm242, %v273, 0.0
      %284 = vadd.xlane.f32.xlu0 %v283
      %v285 = vpop.xlane.xlu0 %284
      %v286 = vmul.f32 %v276, %v261
      %v287 = vmul.f32 %v279, %v261
      %v288 = vmul.f32 %v282, %v261
      %v289 = vmul.f32 %v285, %v261
      %v290 = vadd.f32 %v286, 1e-05
      %v291 = vadd.f32 %v287, 1e-05
      %v292 = vadd.f32 %v288, 1e-05
      %v293 = vadd.f32 %v289, 1e-05
      %v294 = vrsqrt.pop %v290
      %v295 = vmul.f32 %v294, %v290
      %v296 = vmul.f32 %v295, %v294
      %v297 = vmul.f32 0.5, %v296
      %v298 = vsub.f32 1.5, %v297
      %v299 = vmul.f32 %v294, %v298
      %vm300 = vweird.f32 %v290
      %vm301 = vweird.f32 %v294
      %vm302 = vmor %vm300, %vm301
      %v303 = vsel %vm302, %v294, %v299
      %v304 = vrsqrt.pop %v291
      %v305 = vmul.f32 %v304, %v291
      %v306 = vmul.f32 %v305, %v304
      %v307 = vmul.f32 0.5, %v306
      %v308 = vsub.f32 1.5, %v307
      %v309 = vmul.f32 %v304, %v308
      %vm310 = vweird.f32 %v291
      %vm311 = vweird.f32 %v304
      %vm312 = vmor %vm310, %vm311
      %v313 = vsel %vm312, %v304, %v309
      %v314 = vrsqrt.pop %v292
      %v315 = vmul.f32 %v314, %v292
      %v316 = vmul.f32 %v315, %v314
      %v317 = vmul.f32 0.5, %v316
      %v318 = vsub.f32 1.5, %v317
      %v319 = vmul.f32 %v314, %v318
      %vm320 = vweird.f32 %v292
      %vm321 = vweird.f32 %v314
      %vm322 = vmor %vm320, %vm321
      %v323 = vsel %vm322, %v314, %v319
      %v324 = vrsqrt.pop %v293
      %v325 = vmul.f32 %v324, %v293
      %v326 = vmul.f32 %v325, %v324
      %v327 = vmul.f32 0.5, %v326
      %v328 = vsub.f32 1.5, %v327
      %v329 = vmul.f32 %v324, %v328
      %vm330 = vweird.f32 %v293
      %vm331 = vweird.f32 %v324
      %vm332 = vmor %vm330, %vm331
      %v333 = vsel %vm332, %v324, %v329
      %v334 = vmul.f32 %v266, %v303
      %v335 = vmul.f32 %v267, %v313
      %v336 = vmul.f32 %v268, %v323
      %v337 = vmul.f32 %v269, %v333
      %v338 = vmax.f32 %v334, 0.0
      %v339 = vmax.f32 %v335, 0.0
      %v340 = vmax.f32 %v336, 0.0
      %v341 = vmax.f32 %v337, 0.0
      %342 = vst.msk [vmem:[%s143] sm:$0xff] %vm242, %v338
      %343 = vst.msk [vmem:[%s143 + $0x8] sm:$0xff] %vm242, %v339
      %344 = vst.msk [vmem:[%s143 + $0x10] sm:$0xff] %vm242, %v340
      %345 = vst.msk [vmem:[%s143 + $0x18] sm:$0xff] %vm242, %v341
      %p346 = scmp.lt.s32.totalorder %s13, 1
      %s347 = scalar_select %p346, %s13, 1
      %s348 = smul.addr %s347, 4
      %s349 = smul.addr %s348, 8
      %s350 = scalar_lea.vmem %s2, %s349
      // Predicated region
      $region29: #{content_encoder_forward.9} parent=27 // pred_check
        %p351 = pneg %p78
      $region30: #{content_encoder_forward.9} parent=27 // pred_check_branch
        %353 = sbr.rel (%p351) target = $region32
      $region31: #{content_encoder_forward.9} parent=27 // pred_region
        _
      $region32: #{content_encoder_forward.9} parent=27 // pred_fallthru
        _
    $region28: #{content_encoder_forward.9} parent=5 // pred_fallthru
      _
    %p354 = scmp.le.s32.totalorder 2, %s8
    // Predicated region
    $region33: #{content_encoder_forward.9} parent=5 // pred_check
      %p355 = pneg %p354
    $region34: #{content_encoder_forward.9} parent=5 // pred_check_branch
      %357 = sbr.rel (%p355) target = $region36
    $region35: #{content_encoder_forward.9} parent=5 // pred_region
      %s358 = ssub.s32 %s8, 2
      // Predicated region
      $region37: #{content_encoder_forward.9} parent=35 // pred_check
        %p359 = pneg %p84
      $region38: #{content_encoder_forward.9} parent=35 // pred_check_branch
        %361 = sbr.rel (%p359) target = $region40
      $region39: #{content_encoder_forward.9} parent=35 // pred_region
        %p362 = scmp.lt.s32.totalorder %s14, 1
        %s363 = scalar_select %p362, %s14, 1
        %s364 = smul.addr %s363, 4
        %s365 = smul.addr %s364, 8
        %s366 = scalar_lea.vmem %s2, %s365
      $region40: #{content_encoder_forward.9} parent=35 // pred_fallthru
        _
    $region36: #{content_encoder_forward.9} parent=5 // pred_fallthru
      _
  $region6: #{content_encoder_forward.9} parent=0 // loop_footer
    %s12 = sadd.s32 1, %s8
  $region7: #{content_encoder_forward.9} parent=0 // loop_footer_branch
    %7 = sbr.rel target = $region3
  $region8: #{content_encoder_forward.9} parent=0 // loop_exit
    _

// kernel: content_encoder_forward.10
$region0: #{content_encoder_forward.10}
  #allocation0 [shape = 'u32[]', space=smem, size = 0x4, offset = 0x4, fixed_abs, tag = 'smem constant byte address 0x4 - core index']
  #allocation1 [shape = 'u32[72,128]{1,0:T(1,128)}', space=vmem, size = 0x9000, scoped, tag = 'internal scratch']
  %s0 = inlined_call_operand.vmem [shape: f32[2,384,16], index: 0, kind: input, shape index: {}]
  %s1 = inlined_call_operand.vmem [shape: f32[32,384], index: 1, kind: input, shape index: {}]
  %s2 = inlined_call_operand.vmem [shape: f32[2,32,16], index: 2, kind: output, shape index: {}]
  %s3 = sld [smem:[#allocation0]]
  $region41: #{content_encoder_forward.10} parent=0
    _
  %s5 = ssub.s32 1, %s3
  %s6 = scalar_select 0, %s5, %s3
  loop: start=0, step=1, limit=4
  $region2: #{content_encoder_forward.10} parent=0 // loop_pre_header
    _
  $region3: #{content_encoder_forward.10} parent=0 // loop_header
    %s8 = sphi 0, %s12
    %p9 = scmp.ge.s32.totalorder %s8, 4
    %s18 = sphi 0, %s20
    %s21 = sphi 0, %s18
    %s22 = sphi 0, %s21
    %s38 = sphi 0, %s22
    %s42 = sphi 0, %s42
    %s44 = sphi 0, %s42
    %s45 = sphi 0, %s44
    %s59 = sphi 0, %s45
    %s65 = sphi 0, %s67
    %s68 = sphi 0, %s65
    %s69 = sphi 0, %s68
    %s85 = sphi 0, %s69
  $region4: #{content_encoder_forward.10} parent=0 // loop_header_branch
    %11 = sbr.rel (%p9) target = $region8
  $region5: #{content_encoder_forward.10} parent=0 // loop_body
    %s13 = ssub.s32 %s8, 1
    %s14 = ssub.s32 %s8, 2
    %s15 = sadd.s32 %s8, 1
    %s16 = ssub.s32 %s8, %s15
    %p17 = scmp.eq.s32.totalorder %s16, 0
    %s19 = sadd.s32 %s18, 1
    %s20 = scalar_select %p17, %s18, %s19
    %p23 = pneg %p17
    %p24 = scmp.eq.s32.totalorder %s8, 1
    %p25 = por %p23, %p24
    %p26 = scmp.ne.s32.totalorder %s18, %s21
    %p27 = scmp.eq.s32.totalorder %s8, 0
    %p28 = por %p26, %p27
    %p29 = scmp.ne.s32.totalorder %s18, %s21
    %p30 = scmp.eq.s32.totalorder %s13, 1
    %p31 = por %p29, %p30
    %p32 = scmp.ne.s32.totalorder %s21, %s22
    %p33 = scmp.eq.s32.totalorder %s13, 0
    %p34 = por %p32, %p33
    %p35 = scmp.ne.s32.totalorder %s21, %s22
    %p36 = scmp.eq.s32.totalorder %s14, 1
    %p37 = por %p35, %p36
    %p39 = scmp.ne.s32.totalorder %s22, %s38
    %p40 = scmp.eq.s32.totalorder %s14, 0
    %p41 = por %p39, %p40
    %s43 = sadd.s32 %s42, 1
    %p46 = scmp.eq.s32.totalorder %s8, 1
    %p47 = scmp.ne.s32.totalorder %s42, %s44
    %p48 = scmp.eq.s32.totalorder %s8, 0
    %p49 = por %p47, %p48
    %p50 = scmp.ne.s32.totalorder %s42, %s44
    %p51 = scmp.eq.s32.totalorder %s13, 1
    %p52 = por %p50, %p51
    %p53 = scmp.ne.s32.totalorder %s44, %s45
    %p54 = scmp.eq.s32.totalorder %s13, 0
    %p55 = por %p53, %p54
    %p56 = scmp.ne.s32.totalorder %s44, %s45
    %p57 = scmp.eq.s32.totalorder %s14, 1
    %p58 = por %p56, %p57
    %p60 = scmp.ne.s32.totalorder %s45, %s59
    %p61 = scmp.eq.s32.totalorder %s14, 0
    %p62 = por %p60, %p61
    %s63 = ssub.s32 %s8, %s15
    %p64 = scmp.eq.s32.totalorder %s63, 0
    %s66 = sadd.s32 %s65, 1
    %s67 = scalar_select %p64, %s65, %s66
    %p70 = pneg %p64
    %p71 = scmp.eq.s32.totalorder %s8, 1
    %p72 = por %p70, %p71
    %p73 = scmp.ne.s32.totalorder %s65, %s68
    %p74 = scmp.eq.s32.totalorder %s8, 0
    %p75 = por %p73, %p74
    %p76 = scmp.ne.s32.totalorder %s65, %s68
    %p77 = scmp.eq.s32.totalorder %s13, 1
    %p78 = por %p76, %p77
    %p79 = scmp.ne.s32.totalorder %s68, %s69
    %p80 = scmp.eq.s32.totalorder %s13, 0
    %p81 = por %p79, %p80
    %p82 = scmp.ne.s32.totalorder %s68, %s69
    %p83 = scmp.eq.s32.totalorder %s14, 1
    %p84 = por %p82, %p83
    %p86 = scmp.ne.s32.totalorder %s69, %s85
    %p87 = scmp.eq.s32.totalorder %s14, 0
    %p88 = por %p86, %p87
    %p89 = scmp.le.s32.totalorder 1, %s8
    %p90 = scmp.lt.s32.totalorder %s8, 3
    %p91 = pnand %p89, %p90
    %p92 = pneg %p91
    // Predicated region
    $region9: #{content_encoder_forward.10} parent=5 // pred_check
      _
    $region10: #{content_encoder_forward.10} parent=5 // pred_check_branch
      %94 = sbr.rel (%p91) target = $region12
    $region11: #{content_encoder_forward.10} parent=5 // pred_region
      %s95 = ssub.s32 %s8, 1
      // Predicated region
      $region13: #{content_encoder_forward.10} parent=11 // pred_check
        %p96 = pneg %p55
      $region14: #{content_encoder_forward.10} parent=11 // pred_check_branch
        %98 = sbr.rel (%p96) target = $region16
      $region15: #{content_encoder_forward.10} parent=11 // pred_region
        _
      $region16: #{content_encoder_forward.10} parent=11 // pred_fallthru
        _
    $region12: #{content_encoder_forward.10} parent=5 // pred_fallthru
      _
    %p99 = scmp.lt.s32.totalorder %s8, 2
    // Predicated region
    $region17: #{content_encoder_forward.10} parent=5 // pred_check
      %p100 = pneg %p99
    $region18: #{content_encoder_forward.10} parent=5 // pred_check_branch
      %102 = sbr.rel (%p100) target = $region20
    $region19: #{content_encoder_forward.10} parent=5 // pred_region
      // Predicated region
      $region21: #{content_encoder_forward.10} parent=19 // pred_check
        %p103 = pneg %p28
      $region22: #{content_encoder_forward.10} parent=19 // pred_check_branch
        %105 = sbr.rel (%p103) target = $region24
      $region23: #{content_encoder_forward.10} parent=19 // pred_region
        %p106 = scmp.lt.s32.totalorder %s8, 1
        %s107 = scalar_select %p106, %s8, 1
        %s108 = smul.addr %s107, 48
        %s109 = smul.addr %s108, 8
        %s110 = scalar_lea.vmem %s0, %s109
      $region24: #{content_encoder_forward.10} parent=19 // pred_fallthru
        _
    $region20: #{content_encoder_forward.10} parent=5 // pred_fallthru
      _
    %p111 = scmp.le.s32.totalorder 1, %s8
    %p112 = scmp.lt.s32.totalorder %s8, 3
    %p113 = pnand %p111, %p112
    %p114 = pneg %p113
    // Predicated region
    $region25: #{content_encoder_forward.10} parent=5 // pred_check
      _
    $region26: #{content_encoder_forward.10} parent=5 // pred_check_branch
      %116 = sbr.rel (%p113) target = $region28
    $region27: #{content_encoder_forward.10} parent=5 // pred_region
      %s117 = ssub.s32 %s8, 1
      %p118 = scmp.lt.s32.totalorder %s13, 1
      %s119 = scalar_select %p118, %s13, 1
      %s120 = smul.addr %s119, 48
      %s121 = smul.addr %s120, 8
      %s122 = scalar_lea.vmem %s0, %s121
      %p123 = pneg %p34
      %p124 = pneg %p31
      %p125 = pneg %p55
      %p126 = pneg %p52
      %p127 = pneg %p81
      %p128 = pneg %p78
      %p129 = scmp.lt.s32.totalorder %s13, 1
      %s130 = scalar_select %p129, %s13, 1
      %s131 = smul.addr %s130, 4
      %s132 = smul.addr %s131, 8
      %s133 = scalar_lea.vmem %s2, %s132
      %p134 = scmp.lt.s32.totalorder %s13, 1
      %s135 = scalar_select %p134, %s13, 1
      %s136 = smul.addr %s135, 48
      %s137 = smul.addr %s136, 8
      %s138 = scalar_lea.vmem %s0, %s137
      %p139 = scmp.lt.s32.totalorder %s13, 1
      %s140 = scalar_select %p139, %s13, 1
      %s141 = smul.addr %s140, 4
      %s142 = smul.addr %s141, 8
      %s143 = scalar_lea.vmem %s2, %s142
      %v144 = vld [vmem:[%s1] sm:$0xff]
      %v145 = vld [vmem:[%s1 + $0x8] sm:$0xff]
      %v146 = vld [vmem:[%s1 + $0x10] sm:$0xff]
      %v147 = vld [vmem:[%s1 + $0x18] sm:$0xff]
      %v148 = vld [vmem:[%s1 + $0x20] sm:$0xff]
      %v149 = vld [vmem:[%s1 + $0x28] sm:$0xff]
      %v150 = vld [vmem:[%s1 + $0x30] sm:$0xff]
      %v151 = vld [vmem:[%s1 + $0x38] sm:$0xff]
      %v152 = vld [vmem:[%s1 + $0x40] sm:$0xff]
      %v153 = vld [vmem:[%s1 + $0x48] sm:$0xff]
      %v154 = vld [vmem:[%s1 + $0x50] sm:$0xff]
      %v155 = vld [vmem:[%s1 + $0x58] sm:$0xff]
      %v156 = vld [vmem:[%s138] sm:$0xff]
      %v157 = vld [vmem:[%s138 + $0x8] sm:$0xff]
      %v158 = vld [vmem:[%s138 + $0x10] sm:$0xff]
      %v159 = vld [vmem:[%s138 + $0x18] sm:$0xff]
      %v160 = vld [vmem:[%s138 + $0x20] sm:$0xff]
      %v161 = vld [vmem:[%s138 + $0x28] sm:$0xff]
      %v162 = vld [vmem:[%s138 + $0x30] sm:$0xff]
      %v163 = vld [vmem:[%s138 + $0x38] sm:$0xff]
      %v164 = vld [vmem:[%s138 + $0x40] sm:$0xff]
      %v165 = vld [vmem:[%s138 + $0x48] sm:$0xff]
      %v166 = vld [vmem:[%s138 + $0x50] sm:$0xff]
      %v167 = vld [vmem:[%s138 + $0x58] sm:$0xff]
      %v168 = vld [vmem:[%s138 + $0x60] sm:$0xff]
      %v169 = vld [vmem:[%s138 + $0x68] sm:$0xff]
      %v170 = vld [vmem:[%s138 + $0x70] sm:$0xff]
      %v171 = vld [vmem:[%s138 + $0x78] sm:$0xff]
      %v172 = vld [vmem:[%s138 + $0x80] sm:$0xff]
      %v173 = vld [vmem:[%s138 + $0x88] sm:$0xff]
      %v174 = vld [vmem:[%s138 + $0x90] sm:$0xff]
      %v175 = vld [vmem:[%s138 + $0x98] sm:$0xff]
      %v176 = vld [vmem:[%s138 + $0xa0] sm:$0xff]
      %v177 = vld [vmem:[%s138 + $0xa8] sm:$0xff]
      %v178 = vld [vmem:[%s138 + $0xb0] sm:$0xff]
      %v179 = vld [vmem:[%s138 + $0xb8] sm:$0xff]
      %v180 = vld [vmem:[%s138 + $0xc0] sm:$0xff]
      %v181 = vld [vmem:[%s138 + $0xc8] sm:$0xff]
      %v182 = vld [vmem:[%s138 + $0xd0] sm:$0xff]
      %v183 = vld [vmem:[%s138 + $0xd8] sm:$0xff]
      %v184 = vld [vmem:[%s138 + $0xe0] sm:$0xff]
      %v185 = vld [vmem:[%s138 + $0xe8] sm:$0xff]
      %v186 = vld [vmem:[%s138 + $0xf0] sm:$0xff]
      %v187 = vld [vmem:[%s138 + $0xf8] sm:$0xff]
      %v188 = vld [vmem:[%s138 + $0x100] sm:$0xff]
      %v189 = vld [vmem:[%s138 + $0x108] sm:$0xff]
      %v190 = vld [vmem:[%s138 + $0x110] sm:$0xff]
      %v191 = vld [vmem:[%s138 + $0x118] sm:$0xff]
      %v192 = vld [vmem:[%s138 + $0x120] sm:$0xff]
      %v193 = vld [vmem:[%s138 + $0x128] sm:$0xff]
      %v194 = vld [vmem:[%s138 + $0x130] sm:$0xff]
      %v195 = vld [vmem:[%s138 + $0x138] sm:$0xff]
      %v196 = vld [vmem:[%s138 + $0x140] sm:$0xff]
      %v197 = vld [vmem:[%s138 + $0x148] sm:$0xff]
      %v198 = vld [vmem:[%s138 + $0x150] sm:$0xff]
      %v199 = vld [vmem:[%s138 + $0x158] sm:$0xff]
      %v200 = vld [vmem:[%s138 + $0x160] sm:$0xff]
      %v201 = vld [vmem:[%s138 + $0x168] sm:$0xff]
      %v202 = vld [vmem:[%s138 + $0x170] sm:$0xff]
      %v203 = vld [vmem:[%s138 + $0x178] sm:$0xff]
      %204 = vmatpush.msra.mxu0 %v171
      %205 = vmatpush.msra.mxu0 %v170
      %206 = vmatpush.msra.mxu0 %v169
      %207 = vmatpush.msra.mxu0 %v168
      %208 = vmatpush.msra.mxu0 %v167
      %209 = vmatpush.msra.mxu0 %v166
      %210 = vmatpush.msra.mxu0 %v165
      %211 = vmatpush.msra.mxu0 %v164
      %212 = vmatpush.msra.mxu0 %v163
      %213 = vmatpush.msra.mxu0 %v162
      %214 = vmatpush.msra.mxu0 %v161
      %215 = vmatpush.msra.mxu0 %v160
      %216 = vmatpush.msra.mxu0 %v159
      %217 = vmatpush.msra.mxu0 %v158
      %218 = vmatpush.msra.mxu0 %v157
      %219 = vmatpush.msra.mxu0 %v156
      %220 = vmatmul.f32.gmra.mxu0 %v144
      %v221 = vpop.f32.mrf.mxu0
      %v222 = vadd.f32 0.0, %v221
      %223 = vmatmul.f32.gmra.mxu0 %v147
      %v224 = vpop.f32.mrf.mxu0
      %v225 = vadd.f32 0.0, %v224
      %226 = vmatmul.f32.gmra.mxu0 %v150
      %v227 = vpop.f32.mrf.mxu0
      %v228 = vadd.f32 0.0, %v227
      %229 = vmatmul.f32.gmra.mxu0 %v153
      %v230 = vpop.f32.mrf.mxu0
      %v231 = vadd.f32 0.0, %v230
      %232 = vdwg.mxu0
      %233 = vmatpush.msra.mxu0 %v187
      %234 = vmatpush.msra.mxu0 %v186
      %235 = vmatpush.msra.mxu0 %v185
      %236 = vmatpush.msra.mxu0 %v184
      %237 = vmatpush.msra.mxu0 %v183
      %238 = vmatpush.msra.mxu0 %v182
      %239 = vmatpush.msra.mxu0 %v181
      %240 = vmatpush.msra.mxu0 %v180
      %241 = vmatpush.msra.mxu0 %v179
      %242 = vmatpush.msra.mxu0 %v178
      %243 = vmatpush.msra.mxu0 %v177
      %244 = vmatpush.msra.mxu0 %v176
      %245 = vmatpush.msra.mxu0 %v175
      %246 = vmatpush.msra.mxu0 %v174
      %247 = vmatpush.msra.mxu0 %v173
      %248 = vmatpush.msra.mxu0 %v172
      %249 = vmatmul.f32.gmra.mxu0 %v145
      %v250 = vpop.f32.mrf.mxu0
      %v251 = vadd.f32 %v222, %v250
      %252 = vmatmul.f32.gmra.mxu0 %v148
      %v253 = vpop.f32.mrf.mxu0
      %v254 = vadd.f32 %v225, %v253
      %255 = vmatmul.f32.gmra.mxu0 %v151
      %v256 = vpop.f32.mrf.mxu0
      %v257 = vadd.f32 %v228, %v256
      %258 = vmatmul.f32.gmra.mxu0 %v154
      %v259 = vpop.f32.mrf.mxu0
      %v260 = vadd.f32 %v231, %v259
      %261 = vdwg.mxu0
      %262 = vmatpush.msra.mxu0 %v203
      %263 = vmatpush.msra.mxu0 %v202
      %264 = vmatpush.msra.mxu0 %v201
      %265 = vmatpush.msra.mxu0 %v200
      %266 = vmatpush.msra.mxu0 %v199
      %267 = vmatpush.msra.mxu0 %v198
      %268 = vmatpush.msra.mxu0 %v197
      %269 = vmatpush.msra.mxu0 %v196
      %270 = vmatpush.msra.mxu0 %v195
      %271 = vmatpush.msra.mxu0 %v194
      %272 = vmatpush.msra.mxu0 %v193
      %273 = vmatpush.msra.mxu0 %v192
      %274 = vmatpush.msra.mxu0 %v191
      %275 = vmatpush.msra.mxu0 %v190
      %276 = vmatpush.msra.mxu0 %v189
      %277 = vmatpush.msra.mxu0 %v188
      %278 = vmatmul.f32.gmra.mxu0 %v146
      %v279 = vpop.f32.mrf.mxu0
      %v280 = vadd.f32 %v251, %v279
      %281 = vmatmul.f32.gmra.mxu0 %v149
      %v282 = vpop.f32.mrf.mxu0
      %v283 = vadd.f32 %v254, %v282
      %284 = vmatmul.f32.gmra.mxu0 %v152
      %v285 = vpop.f32.mrf.mxu0
      %v286 = vadd.f32 %v257, %v285
      %287 = vmatmul.f32.gmra.mxu0 %v155
      %v288 = vpop.f32.mrf.mxu0
      %v289 = vadd.f32 %v260, %v288
      %290 = vdwg.mxu0
      %vm291 = vcmask 130048
      %v292 = vsel %vm291, %v280, 0.0
      %293 = vadd.xlane.f32.xlu0 %v292
      %v294 = vpop.xlane.xlu0 %293
      %v295 = vsel %vm291, %v283, 0.0
      %296 = vadd.xlane.f32.xlu0 %v295
      %v297 = vpop.xlane.xlu0 %296
      %v298 = vsel %vm291, %v286, 0.0
      %299 = vadd.xlane.f32.xlu0 %v298
      %v300 = vpop.xlane.xlu0 %299
      %v301 = vsel %vm291, %v289, 0.0
      %302 = vadd.xlane.f32.xlu0 %v301
      %v303 = vpop.xlane.xlu0 %302
      %v304 = vrcp.pop 16.0
      %v305 = vmul.f32 16.0, %v304
      %v306 = vsub.f32 1.0, %v305
      %v307 = vmul.f32 %v304, %v306
      %v308 = vadd.f32 %v304, %v307
      %vm309 = vweird.f32 %v304
      %v310 = vsel %vm309, %v304, %v308
      %v311 = vmul.f32 %v294, %v310
      %v312 = vmul.f32 %v297, %v310
      %v313 = vmul.f32 %v300, %v310
      %v314 = vmul.f32 %v303, %v310
      %v315 = vsub.f32 %v280, %v311
      %v316 = vsub.f32 %v283, %v312
      %v317 = vsub.f32 %v286, %v313
      %v318 = vsub.f32 %v289, %v314
      %v319 = vmul.f32 %v315, %v315
      %v320 = vmul.f32 %v316, %v316
      %v321 = vmul.f32 %v317, %v317
      %v322 = vmul.f32 %v318, %v318
      %v323 = vsel %vm291, %v319, 0.0
      %324 = vadd.xlane.f32.xlu0 %v323
      %v325 = vpop.xlane.xlu0 %324
      %v326 = vsel %vm291, %v320, 0.0
      %327 = vadd.xlane.f32.xlu0 %v326
      %v328 = vpop.xlane.xlu0 %327
      %v329 = vsel %vm291, %v321, 0.0
      %330 = vadd.xlane.f32.xlu0 %v329
      %v331 = vpop.xlane.xlu0 %330
      %v332 = vsel %vm291, %v322, 0.0
      %333 = vadd.xlane.f32.xlu0 %v332
      %v334 = vpop.xlane.xlu0 %333
      %v335 = vmul.f32 %v325, %v310
      %v336 = vmul.f32 %v328, %v310
      %v337 = vmul.f32 %v331, %v310
      %v338 = vmul.f32 %v334, %v310
      %v339 = vadd.f32 %v335, 1e-05
      %v340 = vadd.f32 %v336, 1e-05
      %v341 = vadd.f32 %v337, 1e-05
      %v342 = vadd.f32 %v338, 1e-05
      %v343 = vrsqrt.pop %v339
      %v344 = vmul.f32 %v343, %v339
      %v345 = vmul.f32 %v344, %v343
      %v346 = vmul.f32 0.5, %v345
      %v347 = vsub.f32 1.5, %v346
      %v348 = vmul.f32 %v343, %v347
      %vm349 = vweird.f32 %v339
      %vm350 = vweird.f32 %v343
      %vm351 = vmor %vm349, %vm350
      %v352 = vsel %vm351, %v343, %v348
      %v353 = vrsqrt.pop %v340
      %v354 = vmul.f32 %v353, %v340
      %v355 = vmul.f32 %v354, %v353
      %v356 = vmul.f32 0.5, %v355
      %v357 = vsub.f32 1.5, %v356
      %v358 = vmul.f32 %v353, %v357
      %vm359 = vweird.f32 %v340
      %vm360 = vweird.f32 %v353
      %vm361 = vmor %vm359, %vm360
      %v362 = vsel %vm361, %v353, %v358
      %v363 = vrsqrt.pop %v341
      %v364 = vmul.f32 %v363, %v341
      %v365 = vmul.f32 %v364, %v363
      %v366 = vmul.f32 0.5, %v365
      %v367 = vsub.f32 1.5, %v366
      %v368 = vmul.f32 %v363, %v367
      %vm369 = vweird.f32 %v341
      %vm370 = vweird.f32 %v363
      %vm371 = vmor %vm369, %vm370
      %v372 = vsel %vm371, %v363, %v368
      %v373 = vrsqrt.pop %v342
      %v374 = vmul.f32 %v373, %v342
      %v375 = vmul.f32 %v374, %v373
      %v376 = vmul.f32 0.5, %v375
      %v377 = vsub.f32 1.5, %v376
      %v378 = vmul.f32 %v373, %v377
      %vm379 = vweird.f32 %v342
      %vm380 = vweird.f32 %v373
      %vm381 = vmor %vm379, %vm380
      %v382 = vsel %vm381, %v373, %v378
      %v383 = vmul.f32 %v315, %v352
      %v384 = vmul.f32 %v316, %v362
      %v385 = vmul.f32 %v317, %v372
      %v386 = vmul.f32 %v318, %v382
      %v387 = vmax.f32 %v383, 0.0
      %v388 = vmax.f32 %v384, 0.0
      %v389 = vmax.f32 %v385, 0.0
      %v390 = vmax.f32 %v386, 0.0
      %391 = vst.msk [vmem:[%s143] sm:$0xff] %vm291, %v387
      %392 = vst.msk [vmem:[%s143 + $0x8] sm:$0xff] %vm291, %v388
      %393 = vst.msk [vmem:[%s143 + $0x10] sm:$0xff] %vm291, %v389
      %394 = vst.msk [vmem:[%s143 + $0x18] sm:$0xff] %vm291, %v390
      %p395 = scmp.lt.s32.totalorder %s13, 1
      %s396 = scalar_select %p395, %s13, 1
      %s397 = smul.addr %s396, 4
      %s398 = smul.addr %s397, 8
      %s399 = scalar_lea.vmem %s2, %s398
      // Predicated region
      $region29: #{content_encoder_forward.10} parent=27 // pred_check
        %p400 = pneg %p78
      $region30: #{content_encoder_forward.10} parent=27 // pred_check_branch
        %402 = sbr.rel (%p400) target = $region32
      $region31: #{content_encoder_forward.10} parent=27 // pred_region
        _
      $region32: #{content_encoder_forward.10} parent=27 // pred_fallthru
        _
    $region28: #{content_encoder_forward.10} parent=5 // pred_fallthru
      _
    %p403 = scmp.le.s32.totalorder 2, %s8
    // Predicated region
    $region33: #{content_encoder_forward.10} parent=5 // pred_check
      %p404 = pneg %p403
    $region34: #{content_encoder_forward.10} parent=5 // pred_check_branch
      %406 = sbr.rel (%p404) target = $region36
    $region35: #{content_encoder_forward.10} parent=5 // pred_region
      %s407 = ssub.s32 %s8, 2
      // Predicated region
      $region37: #{content_encoder_forward.10} parent=35 // pred_check
        %p408 = pneg %p84
      $region38: #{content_encoder_forward.10} parent=35 // pred_check_branch
        %410 = sbr.rel (%p408) target = $region40
      $region39: #{content_encoder_forward.10} parent=35 // pred_region
        %p411 = scmp.lt.s32.totalorder %s14, 1
        %s412 = scalar_select %p411, %s14, 1
        %s413 = smul.addr %s412, 4
        %s414 = smul.addr %s413, 8
        %s415 = scalar_lea.vmem %s2, %s414
      $region40: #{content_encoder_forward.10} parent=35 // pred_fallthru
        _
    $region36: #{content_encoder_forward.10} parent=5 // pred_fallthru
      _
  $region6: #{content_encoder_forward.10} parent=0 // loop_footer
    %s12 = sadd.s32 1, %s8
  $region7: #{content_encoder_forward.10} parent=0 // loop_footer_branch
    %7 = sbr.rel target = $region3
  $region8: #{content_encoder_forward.10} parent=0 // loop_exit
    _

// kernel: content_encoder_forward.11
$region0: #{content_encoder_forward.11}
  #allocation0 [shape = 'u32[]', space=smem, size = 0x4, offset = 0x4, fixed_abs, tag = 'smem constant byte address 0x4 - core index']
  #allocation1 [shape = 'u32[72,128]{1,0:T(1,128)}', space=vmem, size = 0x9000, scoped, tag = 'internal scratch']
  %s0 = inlined_call_operand.vmem [shape: f32[2,384,16], index: 0, kind: input, shape index: {}]
  %s1 = inlined_call_operand.vmem [shape: f32[32,384], index: 1, kind: input, shape index: {}]
  %s2 = inlined_call_operand.vmem [shape: f32[2,32,16], index: 2, kind: input, shape index: {}]
  %s3 = inlined_call_operand.vmem [shape: f32[2,32,16], index: 3, kind: output, shape index: {}]
  %s4 = sld [smem:[#allocation0]]
  $region45: #{content_encoder_forward.11} parent=0
    _
  %s6 = ssub.s32 1, %s4
  %s7 = scalar_select 0, %s6, %s4
  loop: start=0, step=1, limit=4
  $region2: #{content_encoder_forward.11} parent=0 // loop_pre_header
    _
  $region3: #{content_encoder_forward.11} parent=0 // loop_header
    %s9 = sphi 0, %s13
    %p10 = scmp.ge.s32.totalorder %s9, 4
    %s19 = sphi 0, %s21
    %s22 = sphi 0, %s19
    %s23 = sphi 0, %s22
    %s39 = sphi 0, %s23
    %s43 = sphi 0, %s43
    %s45 = sphi 0, %s43
    %s46 = sphi 0, %s45
    %s60 = sphi 0, %s46
    %s66 = sphi 0, %s68
    %s69 = sphi 0, %s66
    %s70 = sphi 0, %s69
    %s86 = sphi 0, %s70
    %s92 = sphi 0, %s94
    %s95 = sphi 0, %s92
    %s96 = sphi 0, %s95
    %s112 = sphi 0, %s96
  $region4: #{content_encoder_forward.11} parent=0 // loop_header_branch
    %12 = sbr.rel (%p10) target = $region8
  $region5: #{content_encoder_forward.11} parent=0 // loop_body
    %s14 = ssub.s32 %s9, 1
    %s15 = ssub.s32 %s9, 2
    %s16 = sadd.s32 %s9, 1
    %s17 = ssub.s32 %s9, %s16
    %p18 = scmp.eq.s32.totalorder %s17, 0
    %s20 = sadd.s32 %s19, 1
    %s21 = scalar_select %p18, %s19, %s20
    %p24 = pneg %p18
    %p25 = scmp.eq.s32.totalorder %s9, 1
    %p26 = por %p24, %p25
    %p27 = scmp.ne.s32.totalorder %s19, %s22
    %p28 = scmp.eq.s32.totalorder %s9, 0
    %p29 = por %p27, %p28
    %p30 = scmp.ne.s32.totalorder %s19, %s22
    %p31 = scmp.eq.s32.totalorder %s14, 1
    %p32 = por %p30, %p31
    %p33 = scmp.ne.s32.totalorder %s22, %s23
    %p34 = scmp.eq.s32.totalorder %s14, 0
    %p35 = por %p33, %p34
    %p36 = scmp.ne.s32.totalorder %s22, %s23
    %p37 = scmp.eq.s32.totalorder %s15, 1
    %p38 = por %p36, %p37
    %p40 = scmp.ne.s32.totalorder %s23, %s39
    %p41 = scmp.eq.s32.totalorder %s15, 0
    %p42 = por %p40, %p41
    %s44 = sadd.s32 %s43, 1
    %p47 = scmp.eq.s32.totalorder %s9, 1
    %p48 = scmp.ne.s32.totalorder %s43, %s45
    %p49 = scmp.eq.s32.totalorder %s9, 0
    %p50 = por %p48, %p49
    %p51 = scmp.ne.s32.totalorder %s43, %s45
    %p52 = scmp.eq.s32.totalorder %s14, 1
    %p53 = por %p51, %p52
    %p54 = scmp.ne.s32.totalorder %s45, %s46
    %p55 = scmp.eq.s32.totalorder %s14, 0
    %p56 = por %p54, %p55
    %p57 = scmp.ne.s32.totalorder %s45, %s46
    %p58 = scmp.eq.s32.totalorder %s15, 1
    %p59 = por %p57, %p58
    %p61 = scmp.ne.s32.totalorder %s46, %s60
    %p62 = scmp.eq.s32.totalorder %s15, 0
    %p63 = por %p61, %p62
    %s64 = ssub.s32 %s9, %s16
    %p65 = scmp.eq.s32.totalorder %s64, 0
    %s67 = sadd.s32 %s66, 1
    %s68 = scalar_select %p65, %s66, %s67
    %p71 = pneg %p65
    %p72 = scmp.eq.s32.totalorder %s9, 1
    %p73 = por %p71, %p72
    %p74 = scmp.ne.s32.totalorder %s66, %s69
    %p75 = scmp.eq.s32.totalorder %s9, 0
    %p76 = por %p74, %p75
    %p77 = scmp.ne.s32.totalorder %s66, %s69
    %p78 = scmp.eq.s32.totalorder %s14, 1
    %p79 = por %p77, %p78
    %p80 = scmp.ne.s32.totalorder %s69, %s70
    %p81 = scmp.eq.s32.totalorder %s14, 0
    %p82 = por %p80, %p81
    %p83 = scmp.ne.s32.totalorder %s69, %s70
    %p84 = scmp.eq.s32.totalorder %s15, 1
    %p85 = por %p83, %p84
    %p87 = scmp.ne.s32.totalorder %s70, %s86
    %p88 = scmp.eq.s32.totalorder %s15, 0
    %p89 = por %p87, %p88
    %s90 = ssub.s32 %s9, %s16
    %p91 = scmp.eq.s32.totalorder %s90, 0
    %s93 = sadd.s32 %s92, 1
    %s94 = scalar_select %p91, %s92, %s93
    %p97 = pneg %p91
    %p98 = scmp.eq.s32.totalorder %s9, 1
    %p99 = por %p97, %p98
    %p100 = scmp.ne.s32.totalorder %s92, %s95
    %p101 = scmp.eq.s32.totalorder %s9, 0
    %p102 = por %p100, %p101
    %p103 = scmp.ne.s32.totalorder %s92, %s95
    %p104 = scmp.eq.s32.totalorder %s14, 1
    %p105 = por %p103, %p104
    %p106 = scmp.ne.s32.totalorder %s95, %s96
    %p107 = scmp.eq.s32.totalorder %s14, 0
    %p108 = por %p106, %p107
    %p109 = scmp.ne.s32.totalorder %s95, %s96
    %p110 = scmp.eq.s32.totalorder %s15, 1
    %p111 = por %p109, %p110
    %p113 = scmp.ne.s32.totalorder %s96, %s112
    %p114 = scmp.eq.s32.totalorder %s15, 0
    %p115 = por %p113, %p114
    %p116 = scmp.le.s32.totalorder 1, %s9
    %p117 = scmp.lt.s32.totalorder %s9, 3
    %p118 = pnand %p116, %p117
    %p119 = pneg %p118
    // Predicated region
    $region9: #{content_encoder_forward.11} parent=5 // pred_check
      _
    $region10: #{content_encoder_forward.11} parent=5 // pred_check_branch
      %121 = sbr.rel (%p118) target = $region12
    $region11: #{content_encoder_forward.11} parent=5 // pred_region
      %s122 = ssub.s32 %s9, 1
      // Predicated region
      $region13: #{content_encoder_forward.11} parent=11 // pred_check
        %p123 = pneg %p56
      $region14: #{content_encoder_forward.11} parent=11 // pred_check_branch
        %125 = sbr.rel (%p123) target = $region16
      $region15: #{content_encoder_forward.11} parent=11 // pred_region
        _
      $region16: #{content_encoder_forward.11} parent=11 // pred_fallthru
        _
    $region12: #{content_encoder_forward.11} parent=5 // pred_fallthru
      _
    %p126 = scmp.lt.s32.totalorder %s9, 2
    // Predicated region
    $region17: #{content_encoder_forward.11} parent=5 // pred_check
      %p127 = pneg %p126
    $region18: #{content_encoder_forward.11} parent=5 // pred_check_branch
      %129 = sbr.rel (%p127) target = $region20
    $region19: #{content_encoder_forward.11} parent=5 // pred_region
      // Predicated region
      $region21: #{content_encoder_forward.11} parent=19 // pred_check
        %p130 = pneg %p29
      $region22: #{content_encoder_forward.11} parent=19 // pred_check_branch
        %132 = sbr.rel (%p130) target = $region24
      $region23: #{content_encoder_forward.11} parent=19 // pred_region
        %p133 = scmp.lt.s32.totalorder %s9, 1
        %s134 = scalar_select %p133, %s9, 1
        %s135 = smul.addr %s134, 48
        %s136 = smul.addr %s135, 8
        %s137 = scalar_lea.vmem %s0, %s136
      $region24: #{content_encoder_forward.11} parent=19 // pred_fallthru
        _
      // Predicated region
      $region25: #{content_encoder_forward.11} parent=19 // pred_check
        %p138 = pneg %p76
      $region26: #{content_encoder_forward.11} parent=19 // pred_check_branch
        %140 = sbr.rel (%p138) target = $region28
      $region27: #{content_encoder_forward.11} parent=19 // pred_region
        %p141 = scmp.lt.s32.totalorder %s9, 1
        %s142 = scalar_select %p141, %s9, 1
        %s143 = smul.addr %s142, 4
        %s144 = smul.addr %s143, 8
        %s145 = scalar_lea.vmem %s2, %s144
      $region28: #{content_encoder_forward.11} parent=19 // pred_fallthru
        _
    $region20: #{content_encoder_forward.11} parent=5 // pred_fallthru
      _
    %p146 = scmp.le.s32.totalorder 1, %s9
    %p147 = scmp.lt.s32.totalorder %s9, 3
    %p148 = pnand %p146, %p147
    %p149 = pneg %p148
    // Predicated region
    $region29: #{content_encoder_forward.11} parent=5 // pred_check
      _
    $region30: #{content_encoder_forward.11} parent=5 // pred_check_branch
      %151 = sbr.rel (%p148) target = $region32
    $region31: #{content_encoder_forward.11} parent=5 // pred_region
      %s152 = ssub.s32 %s9, 1
      %p153 = scmp.lt.s32.totalorder %s14, 1
      %s154 = scalar_select %p153, %s14, 1
      %s155 = smul.addr %s154, 48
      %s156 = smul.addr %s155, 8
      %s157 = scalar_lea.vmem %s0, %s156
      %p158 = pneg %p35
      %p159 = pneg %p32
      %p160 = pneg %p56
      %p161 = pneg %p53
      %p162 = scmp.lt.s32.totalorder %s14, 1
      %s163 = scalar_select %p162, %s14, 1
      %s164 = smul.addr %s163, 4
      %s165 = smul.addr %s164, 8
      %s166 = scalar_lea.vmem %s2, %s165
      %p167 = pneg %p82
      %p168 = pneg %p79
      %p169 = pneg %p108
      %p170 = pneg %p105
      %p171 = scmp.lt.s32.totalorder %s14, 1
      %s172 = scalar_select %p171, %s14, 1
      %s173 = smul.addr %s172, 4
      %s174 = smul.addr %s173, 8
      %s175 = scalar_lea.vmem %s3, %s174
      %p176 = scmp.lt.s32.totalorder %s14, 1
      %s177 = scalar_select %p176, %s14, 1
      %s178 = smul.addr %s177, 48
      %s179 = smul.addr %s178, 8
      %s180 = scalar_lea.vmem %s0, %s179
      %p181 = scmp.lt.s32.totalorder %s14, 1
      %s182 = scalar_select %p181, %s14, 1
      %s183 = smul.addr %s182, 4
      %s184 = smul.addr %s183, 8
      %s185 = scalar_lea.vmem %s2, %s184
      %p186 = scmp.lt.s32.totalorder %s14, 1
      %s187 = scalar_select %p186, %s14, 1
      %s188 = smul.addr %s187, 4
      %s189 = smul.addr %s188, 8
      %s190 = scalar_lea.vmem %s3, %s189
      %v191 = vld [vmem:[%s1] sm:$0xff]
      %v192 = vld [vmem:[%s1 + $0x8] sm:$0xff]
      %v193 = vld [vmem:[%s1 + $0x10] sm:$0xff]
      %v194 = vld [vmem:[%s1 + $0x18] sm:$0xff]
      %v195 = vld [vmem:[%s1 + $0x20] sm:$0xff]
      %v196 = vld [vmem:[%s1 + $0x28] sm:$0xff]
      %v197 = vld [vmem:[%s1 + $0x30] sm:$0xff]
      %v198 = vld [vmem:[%s1 + $0x38] sm:$0xff]
      %v199 = vld [vmem:[%s1 + $0x40] sm:$0xff]
      %v200 = vld [vmem:[%s1 + $0x48] sm:$0xff]
      %v201 = vld [vmem:[%s1 + $0x50] sm:$0xff]
      %v202 = vld [vmem:[%s1 + $0x58] sm:$0xff]
      %v203 = vld [vmem:[%s180] sm:$0xff]
      %v204 = vld [vmem:[%s180 + $0x8] sm:$0xff]
      %v205 = vld [vmem:[%s180 + $0x10] sm:$0xff]
      %v206 = vld [vmem:[%s180 + $0x18] sm:$0xff]
      %v207 = vld [vmem:[%s180 + $0x20] sm:$0xff]
      %v208 = vld [vmem:[%s180 + $0x28] sm:$0xff]
      %v209 = vld [vmem:[%s180 + $0x30] sm:$0xff]
      %v210 = vld [vmem:[%s180 + $0x38] sm:$0xff]
      %v211 = vld [vmem:[%s180 + $0x40] sm:$0xff]
      %v212 = vld [vmem:[%s180 + $0x48] sm:$0xff]
      %v213 = vld [vmem:[%s180 + $0x50] sm:$0xff]
      %v214 = vld [vmem:[%s180 + $0x58] sm:$0xff]
      %v215 = vld [vmem:[%s180 + $0x60] sm:$0xff]
      %v216 = vld [vmem:[%s180 + $0x68] sm:$0xff]
      %v217 = vld [vmem:[%s180 + $0x70] sm:$0xff]
      %v218 = vld [vmem:[%s180 + $0x78] sm:$0xff]
      %v219 = vld [vmem:[%s180 + $0x80] sm:$0xff]
      %v220 = vld [vmem:[%s180 + $0x88] sm:$0xff]
      %v221 = vld [vmem:[%s180 + $0x90] sm:$0xff]
      %v222 = vld [vmem:[%s180 + $0x98] sm:$0xff]
      %v223 = vld [vmem:[%s180 + $0xa0] sm:$0xff]
      %v224 = vld [vmem:[%s180 + $0xa8] sm:$0xff]
      %v225 = vld [vmem:[%s180 + $0xb0] sm:$0xff]
      %v226 = vld [vmem:[%s180 + $0xb8] sm:$0xff]
      %v227 = vld [vmem:[%s180 + $0xc0] sm:$0xff]
      %v228 = vld [vmem:[%s180 + $0xc8] sm:$0xff]
      %v229 = vld [vmem:[%s180 + $0xd0] sm:$0xff]
      %v230 = vld [vmem:[%s180 + $0xd8] sm:$0xff]
      %v231 = vld [vmem:[%s180 + $0xe0] sm:$0xff]
      %v232 = vld [vmem:[%s180 + $0xe8] sm:$0xff]
      %v233 = vld [vmem:[%s180 + $0xf0] sm:$0xff]
      %v234 = vld [vmem:[%s180 + $0xf8] sm:$0xff]
      %v235 = vld [vmem:[%s180 + $0x100] sm:$0xff]
      %v236 = vld [vmem:[%s180 + $0x108] sm:$0xff]
      %v237 = vld [vmem:[%s180 + $0x110] sm:$0xff]
      %v238 = vld [vmem:[%s180 + $0x118] sm:$0xff]
      %v239 = vld [vmem:[%s180 + $0x120] sm:$0xff]
      %v240 = vld [vmem:[%s180 + $0x128] sm:$0xff]
      %v241 = vld [vmem:[%s180 + $0x130] sm:$0xff]
      %v242 = vld [vmem:[%s180 + $0x138] sm:$0xff]
      %v243 = vld [vmem:[%s180 + $0x140] sm:$0xff]
      %v244 = vld [vmem:[%s180 + $0x148] sm:$0xff]
      %v245 = vld [vmem:[%s180 + $0x150] sm:$0xff]
      %v246 = vld [vmem:[%s180 + $0x158] sm:$0xff]
      %v247 = vld [vmem:[%s180 + $0x160] sm:$0xff]
      %v248 = vld [vmem:[%s180 + $0x168] sm:$0xff]
      %v249 = vld [vmem:[%s180 + $0x170] sm:$0xff]
      %v250 = vld [vmem:[%s180 + $0x178] sm:$0xff]
      %251 = vmatpush.msra.mxu0 %v218
      %252 = vmatpush.msra.mxu0 %v217
      %253 = vmatpush.msra.mxu0 %v216
      %254 = vmatpush.msra.mxu0 %v215
      %255 = vmatpush.msra.mxu0 %v214
      %256 = vmatpush.msra.mxu0 %v213
      %257 = vmatpush.msra.mxu0 %v212
      %258 = vmatpush.msra.mxu0 %v211
      %259 = vmatpush.msra.mxu0 %v210
      %260 = vmatpush.msra.mxu0 %v209
      %261 = vmatpush.msra.mxu0 %v208
      %262 = vmatpush.msra.mxu0 %v207
      %263 = vmatpush.msra.mxu0 %v206
      %264 = vmatpush.msra.mxu0 %v205
      %265 = vmatpush.msra.mxu0 %v204
      %266 = vmatpush.msra.mxu0 %v203
      %267 = vmatmul.f32.gmra.mxu0 %v191
      %v268 = vpop.f32.mrf.mxu0
      %v269 = vadd.f32 0.0, %v268
      %270 = vmatmul.f32.gmra.mxu0 %v194
      %v271 = vpop.f32.mrf.mxu0
      %v272 = vadd.f32 0.0, %v271
      %273 = vmatmul.f32.gmra.mxu0 %v197
      %v274 = vpop.f32.mrf.mxu0
      %v275 = vadd.f32 0.0, %v274
      %276 = vmatmul.f32.gmra.mxu0 %v200
      %v277 = vpop.f32.mrf.mxu0
      %v278 = vadd.f32 0.0, %v277
      %279 = vdwg.mxu0
      %280 = vmatpush.msra.mxu0 %v234
      %281 = vmatpush.msra.mxu0 %v233
      %282 = vmatpush.msra.mxu0 %v232
      %283 = vmatpush.msra.mxu0 %v231
      %284 = vmatpush.msra.mxu0 %v230
      %285 = vmatpush.msra.mxu0 %v229
      %286 = vmatpush.msra.mxu0 %v228
      %287 = vmatpush.msra.mxu0 %v227
      %288 = vmatpush.msra.mxu0 %v226
      %289 = vmatpush.msra.mxu0 %v225
      %290 = vmatpush.msra.mxu0 %v224
      %291 = vmatpush.msra.mxu0 %v223
      %292 = vmatpush.msra.mxu0 %v222
      %293 = vmatpush.msra.mxu0 %v221
      %294 = vmatpush.msra.mxu0 %v220
      %295 = vmatpush.msra.mxu0 %v219
      %296 = vmatmul.f32.gmra.mxu0 %v192
      %v297 = vpop.f32.mrf.mxu0
      %v298 = vadd.f32 %v269, %v297
      %299 = vmatmul.f32.gmra.mxu0 %v195
      %v300 = vpop.f32.mrf.mxu0
      %v301 = vadd.f32 %v272, %v300
      %302 = vmatmul.f32.gmra.mxu0 %v198
      %v303 = vpop.f32.mrf.mxu0
      %v304 = vadd.f32 %v275, %v303
      %305 = vmatmul.f32.gmra.mxu0 %v201
      %v306 = vpop.f32.mrf.mxu0
      %v307 = vadd.f32 %v278, %v306
      %308 = vdwg.mxu0
      %309 = vmatpush.msra.mxu0 %v250
      %310 = vmatpush.msra.mxu0 %v249
      %311 = vmatpush.msra.mxu0 %v248
      %312 = vmatpush.msra.mxu0 %v247
      %313 = vmatpush.msra.mxu0 %v246
      %314 = vmatpush.msra.mxu0 %v245
      %315 = vmatpush.msra.mxu0 %v244
      %316 = vmatpush.msra.mxu0 %v243
      %317 = vmatpush.msra.mxu0 %v242
      %318 = vmatpush.msra.mxu0 %v241
      %319 = vmatpush.msra.mxu0 %v240
      %320 = vmatpush.msra.mxu0 %v239
      %321 = vmatpush.msra.mxu0 %v238
      %322 = vmatpush.msra.mxu0 %v237
      %323 = vmatpush.msra.mxu0 %v236
      %324 = vmatpush.msra.mxu0 %v235
      %325 = vmatmul.f32.gmra.mxu0 %v193
      %v326 = vpop.f32.mrf.mxu0
      %v327 = vadd.f32 %v298, %v326
      %328 = vmatmul.f32.gmra.mxu0 %v196
      %v329 = vpop.f32.mrf.mxu0
      %v330 = vadd.f32 %v301, %v329
      %331 = vmatmul.f32.gmra.mxu0 %v199
      %v332 = vpop.f32.mrf.mxu0
      %v333 = vadd.f32 %v304, %v332
      %334 = vmatmul.f32.gmra.mxu0 %v202
      %v335 = vpop.f32.mrf.mxu0
      %v336 = vadd.f32 %v307, %v335
      %337 = vdwg.mxu0
      %vm338 = vcmask 130048
      %v339 = vsel %vm338, %v327, 0.0
      %340 = vadd.xlane.f32.xlu0 %v339
      %v341 = vpop.xlane.xlu0 %340
      %v342 = vsel %vm338, %v330, 0.0
      %343 = vadd.xlane.f32.xlu0 %v342
      %v344 = vpop.xlane.xlu0 %343
      %v345 = vsel %vm338, %v333, 0.0
      %346 = vadd.xlane.f32.xlu0 %v345
      %v347 = vpop.xlane.xlu0 %346
      %v348 = vsel %vm338, %v336, 0.0
      %349 = vadd.xlane.f32.xlu0 %v348
      %v350 = vpop.xlane.xlu0 %349
      %v351 = vrcp.pop 16.0
      %v352 = vmul.f32 16.0, %v351
      %v353 = vsub.f32 1.0, %v352
      %v354 = vmul.f32 %v351, %v353
      %v355 = vadd.f32 %v351, %v354
      %vm356 = vweird.f32 %v351
      %v357 = vsel %vm356, %v351, %v355
      %v358 = vmul.f32 %v341, %v357
      %v359 = vmul.f32 %v344, %v357
      %v360 = vmul.f32 %v347, %v357
      %v361 = vmul.f32 %v350, %v357
      %v362 = vsub.f32 %v327, %v358
      %v363 = vsub.f32 %v330, %v359
      %v364 = vsub.f32 %v333, %v360
      %v365 = vsub.f32 %v336, %v361
      %v366 = vmul.f32 %v362, %v362
      %v367 = vmul.f32 %v363, %v363
      %v368 = vmul.f32 %v364, %v364
      %v369 = vmul.f32 %v365, %v365
      %v370 = vsel %vm338, %v366, 0.0
      %371 = vadd.xlane.f32.xlu0 %v370
      %v372 = vpop.xlane.xlu0 %371
      %v373 = vsel %vm338, %v367, 0.0
      %374 = vadd.xlane.f32.xlu0 %v373
      %v375 = vpop.xlane.xlu0 %374
      %v376 = vsel %vm338, %v368, 0.0
      %377 = vadd.xlane.f32.xlu0 %v376
      %v378 = vpop.xlane.xlu0 %377
      %v379 = vsel %vm338, %v369, 0.0
      %380 = vadd.xlane.f32.xlu0 %v379
      %v381 = vpop.xlane.xlu0 %380
      %v382 = vmul.f32 %v372, %v357
      %v383 = vmul.f32 %v375, %v357
      %v384 = vmul.f32 %v378, %v357
      %v385 = vmul.f32 %v381, %v357
      %v386 = vadd.f32 %v382, 1e-05
      %v387 = vadd.f32 %v383, 1e-05
      %v388 = vadd.f32 %v384, 1e-05
      %v389 = vadd.f32 %v385, 1e-05
      %v390 = vrsqrt.pop %v386
      %v391 = vmul.f32 %v390, %v386
      %v392 = vmul.f32 %v391, %v390
      %v393 = vmul.f32 0.5, %v392
      %v394 = vsub.f32 1.5, %v393
      %v395 = vmul.f32 %v390, %v394
      %vm396 = vweird.f32 %v386
      %vm397 = vweird.f32 %v390
      %vm398 = vmor %vm396, %vm397
      %v399 = vsel %vm398, %v390, %v395
      %v400 = vrsqrt.pop %v387
      %v401 = vmul.f32 %v400, %v387
      %v402 = vmul.f32 %v401, %v400
      %v403 = vmul.f32 0.5, %v402
      %v404 = vsub.f32 1.5, %v403
      %v405 = vmul.f32 %v400, %v404
      %vm406 = vweird.f32 %v387
      %vm407 = vweird.f32 %v400
      %vm408 = vmor %vm406, %vm407
      %v409 = vsel %vm408, %v400, %v405
      %v410 = vrsqrt.pop %v388
      %v411 = vmul.f32 %v410, %v388
      %v412 = vmul.f32 %v411, %v410
      %v413 = vmul.f32 0.5, %v412
      %v414 = vsub.f32 1.5, %v413
      %v415 = vmul.f32 %v410, %v414
      %vm416 = vweird.f32 %v388
      %vm417 = vweird.f32 %v410
      %vm418 = vmor %vm416, %vm417
      %v419 = vsel %vm418, %v410, %v415
      %v420 = vrsqrt.pop %v389
      %v421 = vmul.f32 %v420, %v389
      %v422 = vmul.f32 %v421, %v420
      %v423 = vmul.f32 0.5, %v422
      %v424 = vsub.f32 1.5, %v423
      %v425 = vmul.f32 %v420, %v424
      %vm426 = vweird.f32 %v389
      %vm427 = vweird.f32 %v420
      %vm428 = vmor %vm426, %vm427
      %v429 = vsel %vm428, %v420, %v425
      %v430 = vmul.f32 %v362, %v399
      %v431 = vmul.f32 %v363, %v409
      %v432 = vmul.f32 %v364, %v419
      %v433 = vmul.f32 %v365, %v429
      %v434 = vld [vmem:[%s185] sm:$0xff]
      %v435 = vld [vmem:[%s185 + $0x8] sm:$0xff]
      %v436 = vld [vmem:[%s185 + $0x10] sm:$0xff]
      %v437 = vld [vmem:[%s185 + $0x18] sm:$0xff]
      %v438 = vadd.f32 %v430, %v434
      %v439 = vadd.f32 %v431, %v435
      %v440 = vadd.f32 %v432, %v436
      %v441 = vadd.f32 %v433, %v437
      %442 = vst.msk [vmem:[%s190] sm:$0xff] %vm338, %v438
      %443 = vst.msk [vmem:[%s190 + $0x8] sm:$0xff] %vm338, %v439
      %444 = vst.msk [vmem:[%s190 + $0x10] sm:$0xff] %vm338, %v440
      %445 = vst.msk [vmem:[%s190 + $0x18] sm:$0xff] %vm338, %v441
      %p446 = scmp.lt.s32.totalorder %s14, 1
      %s447 = scalar_select %p446, %s14, 1
      %s448 = smul.addr %s447, 4
      %s449 = smul.addr %s448, 8
      %s450 = scalar_lea.vmem %s3, %s449
      // Predicated region
      $region33: #{content_encoder_forward.11} parent=31 // pred_check
        %p451 = pneg %p105
      $region34: #{content_encoder_forward.11} parent=31 // pred_check_branch
        %453 = sbr.rel (%p451) target = $region36
      $region35: #{content_encoder_forward.11} parent=31 // pred_region
        _
      $region36: #{content_encoder_forward.11} parent=31 // pred_fallthru
        _
    $region32: #{content_encoder_forward.11} parent=5 // pred_fallthru
      _
    %p454 = scmp.le.s32.totalorder 2, %s9
    // Predicated region
    $region37: #{content_encoder_forward.11} parent=5 // pred_check
      %p455 = pneg %p454
    $region38: #{content_encoder_forward.11} parent=5 // pred_check_branch
      %457 = sbr.rel (%p455) target = $region40
    $region39: #{content_encoder_forward.11} parent=5 // pred_region
      %s458 = ssub.s32 %s9, 2
      // Predicated region
      $region41: #{content_encoder_forward.11} parent=39 // pred_check
        %p459 = pneg %p111
      $region42: #{content_encoder_forward.11} parent=39 // pred_check_branch
        %461 = sbr.rel (%p459) target = $region44
      $region43: #{content_encoder_forward.11} parent=39 // pred_region
        %p462 = scmp.lt.s32.totalorder %s15, 1
        %s463 = scalar_select %p462, %s15, 1
        %s464 = smul.addr %s463, 4
        %s465 = smul.addr %s464, 8
        %s466 = scalar_lea.vmem %s3, %s465
      $region44: #{content_encoder_forward.11} parent=39 // pred_fallthru
        _
    $region40: #{content_encoder_forward.11} parent=5 // pred_fallthru
      _
  $region6: #{content_encoder_forward.11} parent=0 // loop_footer
    %s13 = sadd.s32 1, %s9
  $region7: #{content_encoder_forward.11} parent=0 // loop_footer_branch
    %8 = sbr.rel target = $region3
  $region8: #{content_encoder_forward.11} parent=0 // loop_exit
    _

</llo_original>
